<compile_context>
chip_gen: v7x
topology: tpu7x:2x2x1
jax: 0.10.0
libtpu: 0.0.40
codegen_flags: <defaults>
</compile_context>

<pallas_src>
import functools
import math

import jax
import jax.numpy as jnp
from jax import lax
from jax.experimental import pallas as pl
from jax.experimental.pallas import tpu as pltpu

KSIZE = 5
STRIDE = 2
BN_EPS = 1e-5
LANE = 128
SUBLANE = 8
ROW_BLOCK = 256  # MXU row tile for the large first conv layer


def _round_up(x, m):
    return (x + m - 1) // m * m


# ---------------------------------------------------------------------------
# Pallas kernel: out = act((x @ w) * scale + shift)
#   x: [rb, Kp]  w: [Kp, C]  scale/shift: [1, C]  out: [rb, C]
# ---------------------------------------------------------------------------
def _gemm_affine_kernel(x_ref, w_ref, scale_ref, shift_ref, o_ref, *, apply_relu):
    h = jnp.dot(x_ref[...], w_ref[...], preferred_element_type=jnp.float32)
    # conv bias + BatchNorm folded into a per-output-channel affine
    # (implicit (1, C) -> (rb, C) broadcast; no explicit broadcast_in_dim).
    h = h * scale_ref[...] + shift_ref[...]
    if apply_relu:
        h = jnp.maximum(h, 0.0)
    o_ref[...] = h


def fused_gemm_affine(x, w, scale, shift, *, apply_relu, row_block=ROW_BLOCK):
    """x: [M, K] f32, w: [K, C] f32, scale/shift: [1, C] f32 -> [M, C] f32."""
    M, K = x.shape
    C = w.shape[1]

    # Lane-dense contraction dim (multiple of 128) and sublane-aligned rows.
    Kp = _round_up(K, LANE)
    if M >= row_block:
        Mp = _round_up(M, row_block)
        rb = row_block
    else:
        Mp = _round_up(M, SUBLANE)
        rb = Mp

    xp = jnp.pad(x, ((0, Mp - M), (0, Kp - K)))
    wp = jnp.pad(w, ((0, Kp - K), (0, 0)))

    kernel = functools.partial(_gemm_affine_kernel, apply_relu=apply_relu)
    out = pl.pallas_call(
        kernel,
        out_shape=jax.ShapeDtypeStruct((Mp, C), jnp.float32),
        grid_spec=pltpu.PrefetchScalarGridSpec(
            num_scalar_prefetch=0,
            grid=(Mp // rb,),
            in_specs=[
                pl.BlockSpec((rb, Kp), lambda i: (i, 0)),   # activation rows, tiled
                pl.BlockSpec((Kp, C), lambda i: (0, 0)),    # weights, VMEM-resident
                pl.BlockSpec((1, C), lambda i: (0, 0)),     # per-channel scale
                pl.BlockSpec((1, C), lambda i: (0, 0)),     # per-channel shift
            ],
            out_specs=pl.BlockSpec((rb, C), lambda i: (i, 0)),
        ),
        compiler_params=pltpu.CompilerParams(
            dimension_semantics=("parallel",)),
    )(xp, wp, scale, shift)
    return out[:M]


# ---------------------------------------------------------------------------
# Wrapper-side layout plumbing (pure data movement, no compute).
# ---------------------------------------------------------------------------
def _im2col(x_nhwc, ksize, stride):
    """[N, H, W, C] -> ([N*OH*OW, ksize*ksize*C], (N, OH, OW)); columns ordered (ky, kx, c)."""
    N, H, W, C = x_nhwc.shape
    OH = (H - ksize) // stride + 1
    OW = (W - ksize) // stride + 1
    cols = []
    for ky in range(ksize):
        for kx in range(ksize):
            sl = lax.slice(
                x_nhwc,
                (0, ky, kx, 0),
                (N, ky + stride * (OH - 1) + 1, kx + stride * (OW - 1) + 1, C),
                (1, stride, stride, 1))
            cols.append(sl)                       # (N, OH, OW, C)
    patches = jnp.concatenate(cols, axis=-1)      # (N, OH, OW, k*k*C)
    return patches.reshape(N * OH * OW, ksize * ksize * C), (N, OH, OW)


@jax.jit
def dqn_forward(x_nchw, params):
    """x_nchw: [N, 3, 40, 80] f32 -> [N, 2] f32 (matches PyTorch DQN.forward)."""
    conv_params, (wh, bh) = params
    x = jnp.transpose(x_nchw, (0, 2, 3, 1))               # NHWC

    # TODO(synk): BatchNorm is applied in inference mode (folded running
    # stats); training-mode batch-statistics BN is not implemented.
    for (w, b, gamma, beta, mean, var) in conv_params:
        patches, (N, OH, OW) = _im2col(x, KSIZE, STRIDE)
        cout, cin = w.shape[0], w.shape[1]
        # PyTorch OIHW -> (ky, kx, ci, co) -> [k*k*ci, co], matching im2col column order.
        wmat = jnp.transpose(w, (2, 3, 1, 0)).reshape(KSIZE * KSIZE * cin, cout)
        scale = gamma * lax.rsqrt(var + BN_EPS)
        shift = (b - mean) * scale + beta
        y = fused_gemm_affine(patches, wmat, scale[None, :], shift[None, :],
                              apply_relu=True)
        x = y.reshape(N, OH, OW, cout)

    # PyTorch flattens in NCHW (c, h, w) order before the Linear head.
    N = x.shape[0]
    feat = jnp.transpose(x, (0, 3, 1, 2)).reshape(N, -1)   # [N, 448]
    out = fused_gemm_affine(
        feat, wh.T,
        jnp.ones((1, wh.shape[0]), jnp.float32),            # scale = 1
        bh[None, :],                                        # shift = bias
        apply_relu=False)
    return out


# ---------------------------------------------------------------------------
# Parameters + pure-JAX reference
# ---------------------------------------------------------------------------
def init_params(key):
    """PyTorch-style init; BN uses non-trivial 'running' stats to make the check meaningful."""
    convs = []
    for cin, cout in [(3, 16), (16, 32), (32, 32)]:
        key, kw, kb, kg, kbe, km, kv = jax.random.split(key, 7)
        bound = 1.0 / math.sqrt(cin * KSIZE * KSIZE)
        w = jax.random.uniform(kw, (cout, cin, KSIZE, KSIZE), jnp.float32, -bound, bound)
        b = jax.random.uniform(kb, (cout,), jnp.float32, -bound, bound)
        gamma = jax.random.uniform(kg, (cout,), jnp.float32, 0.5, 1.5)
        beta = jax.random.uniform(kbe, (cout,), jnp.float32, -0.5, 0.5)
        mean = jax.random.uniform(km, (cout,), jnp.float32, -0.5, 0.5)
        var = jax.random.uniform(kv, (cout,), jnp.float32, 0.5, 1.5)
        convs.append((w, b, gamma, beta, mean, var))
    key, kw, kb = jax.random.split(key, 3)
    bound = 1.0 / math.sqrt(448)
    wh = jax.random.uniform(kw, (2, 448), jnp.float32, -bound, bound)
    bh = jax.random.uniform(kb, (2,), jnp.float32, -bound, bound)
    return (tuple(convs), (wh, bh))


def reference_forward(x_nchw, params):
    conv_params, (wh, bh) = params
    h = x_nchw
    for (w, b, gamma, beta, mean, var) in conv_params:
        h = lax.conv_general_dilated(
            h, w, window_strides=(STRIDE, STRIDE), padding="VALID",
            dimension_numbers=("NCHW", "OIHW", "NCHW"),
            precision=lax.Precision.HIGHEST)
        h = h + b[None, :, None, None]
        h = (h - mean[None, :, None, None]) * (gamma * lax.rsqrt(var + BN_EPS))[None, :, None, None]
        h = h + beta[None, :, None, None]
        h = jnp.maximum(h, 0.0)
    feat = h.reshape(h.shape[0], -1)
    return jnp.dot(feat, wh.T, precision=lax.Precision.HIGHEST) + bh[None, :]


if __name__ == "__main__":
    key = jax.random.PRNGKey(0)
    key, kx = jax.random.split(key)

    # Smallest input consistent with the module: the head expects 448 = 32*2*7
    # flattened features, which three k=5/s=2 VALID convs give for 40x80 frames.
    batch = 2
    x = jax.random.normal(kx, (batch, 3, 40, 80), jnp.float32)
    params = init_params(key)

    out = dqn_forward(x, params)
    out = jax.block_until_ready(out)

    ref = reference_forward(x, params)
    assert out.shape == (batch, 2)
    assert jnp.allclose(out, ref, atol=1e-3, rtol=1e-3), float(jnp.max(jnp.abs(out - ref)))

    print("KERNEL_OK")
</pallas_src>

<mosaic_0001>
module attributes {stable_mosaic.version = 11 : i64} {
  func.func @_gemm_affine_kernel(%arg0: i32, %arg1: memref<256x128xf32, #tpu.memory_space<vmem>>, %arg2: memref<128x16xf32, #tpu.memory_space<vmem>>, %arg3: memref<1x16xf32, #tpu.memory_space<vmem>>, %arg4: memref<1x16xf32, #tpu.memory_space<vmem>>, %arg5: memref<256x16xf32, #tpu.memory_space<vmem>>) attributes {dimension_semantics = [#tpu.dimension_semantics<parallel>], iteration_bounds = array<i64: 6>, scalar_prefetch = 0 : i64, scratch_operands = 0 : i64, tpu.core_type = #tpu.core_type<tc>, window_params = [{transform_indices = @transform_0, window_bounds = array<i64: 256, 128>}, {pipeline_mode = #tpu.pipeline_mode<synchronous>, transform_indices = @transform_1, window_bounds = array<i64: 128, 16>}, {pipeline_mode = #tpu.pipeline_mode<synchronous>, transform_indices = @transform_2, window_bounds = array<i64: 1, 16>}, {pipeline_mode = #tpu.pipeline_mode<synchronous>, transform_indices = @transform_3, window_bounds = array<i64: 1, 16>}, {transform_indices = @transform_4, window_bounds = array<i64: 256, 16>}]} {
    %c0 = arith.constant 0 : index
    %c0_0 = arith.constant 0 : index
    %0 = vector.load %arg1[%c0, %c0_0] : memref<256x128xf32, #tpu.memory_space<vmem>>, vector<256x128xf32>
    %c0_1 = arith.constant 0 : index
    %c0_2 = arith.constant 0 : index
    %1 = vector.load %arg2[%c0_1, %c0_2] : memref<128x16xf32, #tpu.memory_space<vmem>>, vector<128x16xf32>
    %cst = arith.constant dense<0.000000e+00> : vector<256x16xf32>
    %2 = tpu.matmul %0, %1, %cst {dimension_numbers = #tpu.dot_dimension_numbers<[1], [0], [0], [1], [0, 0, 1, 1], [], []>} : vector<256x128xf32>, vector<128x16xf32>, vector<256x16xf32> -> vector<256x16xf32>
    %c0_3 = arith.constant 0 : index
    %c0_4 = arith.constant 0 : index
    %3 = vector.load %arg3[%c0_3, %c0_4] : memref<1x16xf32, #tpu.memory_space<vmem>>, vector<1x16xf32>
    %4 = vector.broadcast %3 : vector<1x16xf32> to vector<256x16xf32>
    %5 = arith.mulf %2, %4 : vector<256x16xf32>
    %c0_5 = arith.constant 0 : index
    %c0_6 = arith.constant 0 : index
    %6 = vector.load %arg4[%c0_5, %c0_6] : memref<1x16xf32, #tpu.memory_space<vmem>>, vector<1x16xf32>
    %7 = vector.broadcast %6 : vector<1x16xf32> to vector<256x16xf32>
    %8 = arith.addf %5, %7 : vector<256x16xf32>
    %cst_7 = arith.constant 0.000000e+00 : f32
    %9 = vector.broadcast %cst_7 : f32 to vector<256x16xf32>
    %10 = arith.maximumf %8, %9 : vector<256x16xf32>
    %c0_8 = arith.constant 0 : index
    %c0_9 = arith.constant 0 : index
    %11 = vector.load %arg5[%c0_8, %c0_9] : memref<256x16xf32, #tpu.memory_space<vmem>>, vector<256x16xf32>
    tpu.vector_store %arg5[%c0_8, %c0_9], %10 {strides = array<i32>} : memref<256x16xf32, #tpu.memory_space<vmem>>, vector<256x16xf32>,
    return
  }
  func.func @transform_0(%arg0: i32) -> (i32, i32) {
    %c0_i32 = arith.constant 0 : i32
    %c0_i32_0 = arith.constant 0 : i32
    return %arg0, %c0_i32 : i32, i32
  }
  func.func @transform_1(%arg0: i32) -> (i32, i32) {
    %c0_i32 = arith.constant 0 : i32
    %c0_i32_0 = arith.constant 0 : i32
    %c0_i32_1 = arith.constant 0 : i32
    return %c0_i32, %c0_i32_0 : i32, i32
  }
  func.func @transform_2(%arg0: i32) -> (i32, i32) {
    %c0_i32 = arith.constant 0 : i32
    %c0_i32_0 = arith.constant 0 : i32
    %c0_i32_1 = arith.constant 0 : i32
    return %c0_i32, %c0_i32_0 : i32, i32
  }
  func.func @transform_3(%arg0: i32) -> (i32, i32) {
    %c0_i32 = arith.constant 0 : i32
    %c0_i32_0 = arith.constant 0 : i32
    %c0_i32_1 = arith.constant 0 : i32
    return %c0_i32, %c0_i32_0 : i32, i32
  }
  func.func @transform_4(%arg0: i32) -> (i32, i32) {
    %c0_i32 = arith.constant 0 : i32
    %c0_i32_0 = arith.constant 0 : i32
    return %arg0, %c0_i32 : i32, i32
  }
}

module attributes {stable_mosaic.version = 11 : i64} {
  func.func @_gemm_affine_kernel(%arg0: i32, %arg1: memref<240x512xf32, #tpu.memory_space<vmem>>, %arg2: memref<512x32xf32, #tpu.memory_space<vmem>>, %arg3: memref<1x32xf32, #tpu.memory_space<vmem>>, %arg4: memref<1x32xf32, #tpu.memory_space<vmem>>, %arg5: memref<240x32xf32, #tpu.memory_space<vmem>>) attributes {dimension_semantics = [#tpu.dimension_semantics<parallel>], iteration_bounds = array<i64: 1>, scalar_prefetch = 0 : i64, scratch_operands = 0 : i64, tpu.core_type = #tpu.core_type<tc>, window_params = [{transform_indices = @transform_0, window_bounds = array<i64: 240, 512>}, {pipeline_mode = #tpu.pipeline_mode<synchronous>, transform_indices = @transform_1, window_bounds = array<i64: 512, 32>}, {pipeline_mode = #tpu.pipeline_mode<synchronous>, transform_indices = @transform_2, window_bounds = array<i64: 1, 32>}, {pipeline_mode = #tpu.pipeline_mode<synchronous>, transform_indices = @transform_3, window_bounds = array<i64: 1, 32>}, {transform_indices = @transform_4, window_bounds = array<i64: 240, 32>}]} {
    %c0 = arith.constant 0 : index
    %c0_0 = arith.constant 0 : index
    %0 = vector.load %arg1[%c0, %c0_0] : memref<240x512xf32, #tpu.memory_space<vmem>>, vector<240x512xf32>
    %c0_1 = arith.constant 0 : index
    %c0_2 = arith.constant 0 : index
    %1 = vector.load %arg2[%c0_1, %c0_2] : memref<512x32xf32, #tpu.memory_space<vmem>>, vector<512x32xf32>
    %cst = arith.constant dense<0.000000e+00> : vector<240x32xf32>
    %2 = tpu.matmul %0, %1, %cst {dimension_numbers = #tpu.dot_dimension_numbers<[1], [0], [0], [1], [0, 0, 1, 1], [], []>} : vector<240x512xf32>, vector<512x32xf32>, vector<240x32xf32> -> vector<240x32xf32>
    %c0_3 = arith.constant 0 : index
    %c0_4 = arith.constant 0 : index
    %3 = vector.load %arg3[%c0_3, %c0_4] : memref<1x32xf32, #tpu.memory_space<vmem>>, vector<1x32xf32>
    %4 = vector.broadcast %3 : vector<1x32xf32> to vector<240x32xf32>
    %5 = arith.mulf %2, %4 : vector<240x32xf32>
    %c0_5 = arith.constant 0 : index
    %c0_6 = arith.constant 0 : index
    %6 = vector.load %arg4[%c0_5, %c0_6] : memref<1x32xf32, #tpu.memory_space<vmem>>, vector<1x32xf32>
    %7 = vector.broadcast %6 : vector<1x32xf32> to vector<240x32xf32>
    %8 = arith.addf %5, %7 : vector<240x32xf32>
    %cst_7 = arith.constant 0.000000e+00 : f32
    %9 = vector.broadcast %cst_7 : f32 to vector<240x32xf32>
    %10 = arith.maximumf %8, %9 : vector<240x32xf32>
    %c0_8 = arith.constant 0 : index
    %c0_9 = arith.constant 0 : index
    %11 = vector.load %arg5[%c0_8, %c0_9] : memref<240x32xf32, #tpu.memory_space<vmem>>, vector<240x32xf32>
    tpu.vector_store %arg5[%c0_8, %c0_9], %10 {strides = array<i32>} : memref<240x32xf32, #tpu.memory_space<vmem>>, vector<240x32xf32>,
    return
  }
  func.func @transform_0(%arg0: i32) -> (i32, i32) {
    %c0_i32 = arith.constant 0 : i32
    %c0_i32_0 = arith.constant 0 : i32
    return %arg0, %c0_i32 : i32, i32
  }
  func.func @transform_1(%arg0: i32) -> (i32, i32) {
    %c0_i32 = arith.constant 0 : i32
    %c0_i32_0 = arith.constant 0 : i32
    %c0_i32_1 = arith.constant 0 : i32
    return %c0_i32, %c0_i32_0 : i32, i32
  }
  func.func @transform_2(%arg0: i32) -> (i32, i32) {
    %c0_i32 = arith.constant 0 : i32
    %c0_i32_0 = arith.constant 0 : i32
    %c0_i32_1 = arith.constant 0 : i32
    return %c0_i32, %c0_i32_0 : i32, i32
  }
  func.func @transform_3(%arg0: i32) -> (i32, i32) {
    %c0_i32 = arith.constant 0 : i32
    %c0_i32_0 = arith.constant 0 : i32
    %c0_i32_1 = arith.constant 0 : i32
    return %c0_i32, %c0_i32_0 : i32, i32
  }
  func.func @transform_4(%arg0: i32) -> (i32, i32) {
    %c0_i32 = arith.constant 0 : i32
    %c0_i32_0 = arith.constant 0 : i32
    return %arg0, %c0_i32 : i32, i32
  }
}

module attributes {stable_mosaic.version = 11 : i64} {
  func.func @_gemm_affine_kernel(%arg0: i32, %arg1: memref<32x896xf32, #tpu.memory_space<vmem>>, %arg2: memref<896x32xf32, #tpu.memory_space<vmem>>, %arg3: memref<1x32xf32, #tpu.memory_space<vmem>>, %arg4: memref<1x32xf32, #tpu.memory_space<vmem>>, %arg5: memref<32x32xf32, #tpu.memory_space<vmem>>) attributes {dimension_semantics = [#tpu.dimension_semantics<parallel>], iteration_bounds = array<i64: 1>, scalar_prefetch = 0 : i64, scratch_operands = 0 : i64, tpu.core_type = #tpu.core_type<tc>, window_params = [{transform_indices = @transform_0, window_bounds = array<i64: 32, 896>}, {pipeline_mode = #tpu.pipeline_mode<synchronous>, transform_indices = @transform_1, window_bounds = array<i64: 896, 32>}, {pipeline_mode = #tpu.pipeline_mode<synchronous>, transform_indices = @transform_2, window_bounds = array<i64: 1, 32>}, {pipeline_mode = #tpu.pipeline_mode<synchronous>, transform_indices = @transform_3, window_bounds = array<i64: 1, 32>}, {transform_indices = @transform_4, window_bounds = array<i64: 32, 32>}]} {
    %c0 = arith.constant 0 : index
    %c0_0 = arith.constant 0 : index
    %0 = vector.load %arg1[%c0, %c0_0] : memref<32x896xf32, #tpu.memory_space<vmem>>, vector<32x896xf32>
    %c0_1 = arith.constant 0 : index
    %c0_2 = arith.constant 0 : index
    %1 = vector.load %arg2[%c0_1, %c0_2] : memref<896x32xf32, #tpu.memory_space<vmem>>, vector<896x32xf32>
    %cst = arith.constant dense<0.000000e+00> : vector<32x32xf32>
    %2 = tpu.matmul %0, %1, %cst {dimension_numbers = #tpu.dot_dimension_numbers<[1], [0], [0], [1], [0, 0, 1, 1], [], []>} : vector<32x896xf32>, vector<896x32xf32>, vector<32x32xf32> -> vector<32x32xf32>
    %c0_3 = arith.constant 0 : index
    %c0_4 = arith.constant 0 : index
    %3 = vector.load %arg3[%c0_3, %c0_4] : memref<1x32xf32, #tpu.memory_space<vmem>>, vector<1x32xf32>
    %4 = vector.broadcast %3 : vector<1x32xf32> to vector<32x32xf32>
    %5 = arith.mulf %2, %4 : vector<32x32xf32>
    %c0_5 = arith.constant 0 : index
    %c0_6 = arith.constant 0 : index
    %6 = vector.load %arg4[%c0_5, %c0_6] : memref<1x32xf32, #tpu.memory_space<vmem>>, vector<1x32xf32>
    %7 = vector.broadcast %6 : vector<1x32xf32> to vector<32x32xf32>
    %8 = arith.addf %5, %7 : vector<32x32xf32>
    %cst_7 = arith.constant 0.000000e+00 : f32
    %9 = vector.broadcast %cst_7 : f32 to vector<32x32xf32>
    %10 = arith.maximumf %8, %9 : vector<32x32xf32>
    %c0_8 = arith.constant 0 : index
    %c0_9 = arith.constant 0 : index
    %11 = vector.load %arg5[%c0_8, %c0_9] : memref<32x32xf32, #tpu.memory_space<vmem>>, vector<32x32xf32>
    tpu.vector_store %arg5[%c0_8, %c0_9], %10 {strides = array<i32>} : memref<32x32xf32, #tpu.memory_space<vmem>>, vector<32x32xf32>,
    return
  }
  func.func @transform_0(%arg0: i32) -> (i32, i32) {
    %c0_i32 = arith.constant 0 : i32
    %c0_i32_0 = arith.constant 0 : i32
    return %arg0, %c0_i32 : i32, i32
  }
  func.func @transform_1(%arg0: i32) -> (i32, i32) {
    %c0_i32 = arith.constant 0 : i32
    %c0_i32_0 = arith.constant 0 : i32
    %c0_i32_1 = arith.constant 0 : i32
    return %c0_i32, %c0_i32_0 : i32, i32
  }
  func.func @transform_2(%arg0: i32) -> (i32, i32) {
    %c0_i32 = arith.constant 0 : i32
    %c0_i32_0 = arith.constant 0 : i32
    %c0_i32_1 = arith.constant 0 : i32
    return %c0_i32, %c0_i32_0 : i32, i32
  }
  func.func @transform_3(%arg0: i32) -> (i32, i32) {
    %c0_i32 = arith.constant 0 : i32
    %c0_i32_0 = arith.constant 0 : i32
    %c0_i32_1 = arith.constant 0 : i32
    return %c0_i32, %c0_i32_0 : i32, i32
  }
  func.func @transform_4(%arg0: i32) -> (i32, i32) {
    %c0_i32 = arith.constant 0 : i32
    %c0_i32_0 = arith.constant 0 : i32
    return %arg0, %c0_i32 : i32, i32
  }
}

module attributes {stable_mosaic.version = 11 : i64} {
  func.func @_gemm_affine_kernel(%arg0: i32, %arg1: memref<8x512xf32, #tpu.memory_space<vmem>>, %arg2: memref<512x2xf32, #tpu.memory_space<vmem>>, %arg3: memref<1x2xf32, #tpu.memory_space<vmem>>, %arg4: memref<1x2xf32, #tpu.memory_space<vmem>>, %arg5: memref<8x2xf32, #tpu.memory_space<vmem>>) attributes {dimension_semantics = [#tpu.dimension_semantics<parallel>], iteration_bounds = array<i64: 1>, scalar_prefetch = 0 : i64, scratch_operands = 0 : i64, tpu.core_type = #tpu.core_type<tc>, window_params = [{transform_indices = @transform_0, window_bounds = array<i64: 8, 512>}, {pipeline_mode = #tpu.pipeline_mode<synchronous>, transform_indices = @transform_1, window_bounds = array<i64: 512, 2>}, {pipeline_mode = #tpu.pipeline_mode<synchronous>, transform_indices = @transform_2, window_bounds = array<i64: 1, 2>}, {pipeline_mode = #tpu.pipeline_mode<synchronous>, transform_indices = @transform_3, window_bounds = array<i64: 1, 2>}, {transform_indices = @transform_4, window_bounds = array<i64: 8, 2>}]} {
    %c0 = arith.constant 0 : index
    %c0_0 = arith.constant 0 : index
    %0 = vector.load %arg1[%c0, %c0_0] : memref<8x512xf32, #tpu.memory_space<vmem>>, vector<8x512xf32>
    %c0_1 = arith.constant 0 : index
    %c0_2 = arith.constant 0 : index
    %1 = vector.load %arg2[%c0_1, %c0_2] : memref<512x2xf32, #tpu.memory_space<vmem>>, vector<512x2xf32>
    %cst = arith.constant dense<0.000000e+00> : vector<8x2xf32>
    %2 = tpu.matmul %0, %1, %cst {dimension_numbers = #tpu.dot_dimension_numbers<[1], [0], [0], [1], [0, 0, 1, 1], [], []>} : vector<8x512xf32>, vector<512x2xf32>, vector<8x2xf32> -> vector<8x2xf32>
    %c0_3 = arith.constant 0 : index
    %c0_4 = arith.constant 0 : index
    %3 = vector.load %arg3[%c0_3, %c0_4] : memref<1x2xf32, #tpu.memory_space<vmem>>, vector<1x2xf32>
    %4 = vector.broadcast %3 : vector<1x2xf32> to vector<8x2xf32>
    %5 = arith.mulf %2, %4 : vector<8x2xf32>
    %c0_5 = arith.constant 0 : index
    %c0_6 = arith.constant 0 : index
    %6 = vector.load %arg4[%c0_5, %c0_6] : memref<1x2xf32, #tpu.memory_space<vmem>>, vector<1x2xf32>
    %7 = vector.broadcast %6 : vector<1x2xf32> to vector<8x2xf32>
    %8 = arith.addf %5, %7 : vector<8x2xf32>
    %c0_7 = arith.constant 0 : index
    %c0_8 = arith.constant 0 : index
    %9 = vector.load %arg5[%c0_7, %c0_8] : memref<8x2xf32, #tpu.memory_space<vmem>>, vector<8x2xf32>
    tpu.vector_store %arg5[%c0_7, %c0_8], %8 {strides = array<i32>} : memref<8x2xf32, #tpu.memory_space<vmem>>, vector<8x2xf32>,
    return
  }
  func.func @transform_0(%arg0: i32) -> (i32, i32) {
    %c0_i32 = arith.constant 0 : i32
    %c0_i32_0 = arith.constant 0 : i32
    return %arg0, %c0_i32 : i32, i32
  }
  func.func @transform_1(%arg0: i32) -> (i32, i32) {
    %c0_i32 = arith.constant 0 : i32
    %c0_i32_0 = arith.constant 0 : i32
    %c0_i32_1 = arith.constant 0 : i32
    return %c0_i32, %c0_i32_0 : i32, i32
  }
  func.func @transform_2(%arg0: i32) -> (i32, i32) {
    %c0_i32 = arith.constant 0 : i32
    %c0_i32_0 = arith.constant 0 : i32
    %c0_i32_1 = arith.constant 0 : i32
    return %c0_i32, %c0_i32_0 : i32, i32
  }
  func.func @transform_3(%arg0: i32) -> (i32, i32) {
    %c0_i32 = arith.constant 0 : i32
    %c0_i32_0 = arith.constant 0 : i32
    %c0_i32_1 = arith.constant 0 : i32
    return %c0_i32, %c0_i32_0 : i32, i32
  }
  func.func @transform_4(%arg0: i32) -> (i32, i32) {
    %c0_i32 = arith.constant 0 : i32
    %c0_i32_0 = arith.constant 0 : i32
    return %arg0, %c0_i32 : i32, i32
  }
}

</mosaic_0001>

<llo_original>
// kernel: dqn_forward.4
$region0: #{dqn_forward.4}
  #allocation0 [shape = 'u32[]', space=smem, size = 0x4, offset = 0x4, fixed_abs, tag = 'smem constant byte address 0x4 - core index']
  #allocation1 [shape = 'u32[144,128]{1,0:T(1,128)}', space=vmem, size = 0x12000, scoped, tag = 'internal scratch']
  %s0 = inlined_call_operand.vmem [shape: f32[1536,128], index: 0, kind: input, shape index: {}]
  %s1 = inlined_call_operand.vmem [shape: f32[128,16], index: 1, kind: input, shape index: {}]
  %s2 = inlined_call_operand.vmem [shape: f32[1,16], index: 2, kind: input, shape index: {}]
  %s3 = inlined_call_operand.vmem [shape: f32[1,16], index: 3, kind: input, shape index: {}]
  %s4 = inlined_call_operand.vmem [shape: f32[1536,16], index: 4, kind: output, shape index: {}]
  %s5 = sld [smem:[#allocation0]]
  $region49: #{dqn_forward.4} parent=0
    _
  %s7 = ssub.s32 1, %s5
  %s8 = scalar_select 0, %s7, %s5
  loop: start=0, step=1, limit=8
  $region2: #{dqn_forward.4} parent=0 // loop_pre_header
    _
  $region3: #{dqn_forward.4} parent=0 // loop_header
    %s10 = sphi 0, %s14
    %p11 = scmp.ge.s32.totalorder %s10, 8
    %s20 = sphi 0, %s22
    %s23 = sphi 0, %s20
    %s24 = sphi 0, %s23
    %s40 = sphi 0, %s24
    %s44 = sphi 0, %s44
    %s46 = sphi 0, %s44
    %s47 = sphi 0, %s46
    %s61 = sphi 0, %s47
    %s65 = sphi 0, %s65
    %s67 = sphi 0, %s65
    %s68 = sphi 0, %s67
    %s82 = sphi 0, %s68
    %s86 = sphi 0, %s86
    %s88 = sphi 0, %s86
    %s89 = sphi 0, %s88
    %s103 = sphi 0, %s89
    %s109 = sphi 0, %s111
    %s112 = sphi 0, %s109
    %s113 = sphi 0, %s112
    %s129 = sphi 0, %s113
  $region4: #{dqn_forward.4} parent=0 // loop_header_branch
    %13 = sbr.rel (%p11) target = $region8
  $region5: #{dqn_forward.4} parent=0 // loop_body
    %s15 = ssub.s32 %s10, 1
    %s16 = ssub.s32 %s10, 2
    %s17 = sadd.s32 %s10, 1
    %s18 = ssub.s32 %s10, %s17
    %p19 = scmp.eq.s32.totalorder %s18, 0
    %s21 = sadd.s32 %s20, 1
    %s22 = scalar_select %p19, %s20, %s21
    %p25 = pneg %p19
    %p26 = scmp.eq.s32.totalorder %s10, 5
    %p27 = por %p25, %p26
    %p28 = scmp.ne.s32.totalorder %s20, %s23
    %p29 = scmp.eq.s32.totalorder %s10, 0
    %p30 = por %p28, %p29
    %p31 = scmp.ne.s32.totalorder %s20, %s23
    %p32 = scmp.eq.s32.totalorder %s15, 5
    %p33 = por %p31, %p32
    %p34 = scmp.ne.s32.totalorder %s23, %s24
    %p35 = scmp.eq.s32.totalorder %s15, 0
    %p36 = por %p34, %p35
    %p37 = scmp.ne.s32.totalorder %s23, %s24
    %p38 = scmp.eq.s32.totalorder %s16, 5
    %p39 = por %p37, %p38
    %p41 = scmp.ne.s32.totalorder %s24, %s40
    %p42 = scmp.eq.s32.totalorder %s16, 0
    %p43 = por %p41, %p42
    %s45 = sadd.s32 %s44, 1
    %p48 = scmp.eq.s32.totalorder %s10, 5
    %p49 = scmp.ne.s32.totalorder %s44, %s46
    %p50 = scmp.eq.s32.totalorder %s10, 0
    %p51 = por %p49, %p50
    %p52 = scmp.ne.s32.totalorder %s44, %s46
    %p53 = scmp.eq.s32.totalorder %s15, 5
    %p54 = por %p52, %p53
    %p55 = scmp.ne.s32.totalorder %s46, %s47
    %p56 = scmp.eq.s32.totalorder %s15, 0
    %p57 = por %p55, %p56
    %p58 = scmp.ne.s32.totalorder %s46, %s47
    %p59 = scmp.eq.s32.totalorder %s16, 5
    %p60 = por %p58, %p59
    %p62 = scmp.ne.s32.totalorder %s47, %s61
    %p63 = scmp.eq.s32.totalorder %s16, 0
    %p64 = por %p62, %p63
    %s66 = sadd.s32 %s65, 1
    %p69 = scmp.eq.s32.totalorder %s10, 5
    %p70 = scmp.ne.s32.totalorder %s65, %s67
    %p71 = scmp.eq.s32.totalorder %s10, 0
    %p72 = por %p70, %p71
    %p73 = scmp.ne.s32.totalorder %s65, %s67
    %p74 = scmp.eq.s32.totalorder %s15, 5
    %p75 = por %p73, %p74
    %p76 = scmp.ne.s32.totalorder %s67, %s68
    %p77 = scmp.eq.s32.totalorder %s15, 0
    %p78 = por %p76, %p77
    %p79 = scmp.ne.s32.totalorder %s67, %s68
    %p80 = scmp.eq.s32.totalorder %s16, 5
    %p81 = por %p79, %p80
    %p83 = scmp.ne.s32.totalorder %s68, %s82
    %p84 = scmp.eq.s32.totalorder %s16, 0
    %p85 = por %p83, %p84
    %s87 = sadd.s32 %s86, 1
    %p90 = scmp.eq.s32.totalorder %s10, 5
    %p91 = scmp.ne.s32.totalorder %s86, %s88
    %p92 = scmp.eq.s32.totalorder %s10, 0
    %p93 = por %p91, %p92
    %p94 = scmp.ne.s32.totalorder %s86, %s88
    %p95 = scmp.eq.s32.totalorder %s15, 5
    %p96 = por %p94, %p95
    %p97 = scmp.ne.s32.totalorder %s88, %s89
    %p98 = scmp.eq.s32.totalorder %s15, 0
    %p99 = por %p97, %p98
    %p100 = scmp.ne.s32.totalorder %s88, %s89
    %p101 = scmp.eq.s32.totalorder %s16, 5
    %p102 = por %p100, %p101
    %p104 = scmp.ne.s32.totalorder %s89, %s103
    %p105 = scmp.eq.s32.totalorder %s16, 0
    %p106 = por %p104, %p105
    %s107 = ssub.s32 %s10, %s17
    %p108 = scmp.eq.s32.totalorder %s107, 0
    %s110 = sadd.s32 %s109, 1
    %s111 = scalar_select %p108, %s109, %s110
    %p114 = pneg %p108
    %p115 = scmp.eq.s32.totalorder %s10, 5
    %p116 = por %p114, %p115
    %p117 = scmp.ne.s32.totalorder %s109, %s112
    %p118 = scmp.eq.s32.totalorder %s10, 0
    %p119 = por %p117, %p118
    %p120 = scmp.ne.s32.totalorder %s109, %s112
    %p121 = scmp.eq.s32.totalorder %s15, 5
    %p122 = por %p120, %p121
    %p123 = scmp.ne.s32.totalorder %s112, %s113
    %p124 = scmp.eq.s32.totalorder %s15, 0
    %p125 = por %p123, %p124
    %p126 = scmp.ne.s32.totalorder %s112, %s113
    %p127 = scmp.eq.s32.totalorder %s16, 5
    %p128 = por %p126, %p127
    %p130 = scmp.ne.s32.totalorder %s113, %s129
    %p131 = scmp.eq.s32.totalorder %s16, 0
    %p132 = por %p130, %p131
    %p133 = scmp.le.s32.totalorder 1, %s10
    %p134 = scmp.lt.s32.totalorder %s10, 7
    %p135 = pnand %p133, %p134
    %p136 = pneg %p135
    // Predicated region
    $region9: #{dqn_forward.4} parent=5 // pred_check
      _
    $region10: #{dqn_forward.4} parent=5 // pred_check_branch
      %138 = sbr.rel (%p135) target = $region12
    $region11: #{dqn_forward.4} parent=5 // pred_region
      %s139 = ssub.s32 %s10, 1
      // Predicated region
      $region13: #{dqn_forward.4} parent=11 // pred_check
        %p140 = pneg %p57
      $region14: #{dqn_forward.4} parent=11 // pred_check_branch
        %142 = sbr.rel (%p140) target = $region16
      $region15: #{dqn_forward.4} parent=11 // pred_region
        _
      $region16: #{dqn_forward.4} parent=11 // pred_fallthru
        _
      // Predicated region
      $region17: #{dqn_forward.4} parent=11 // pred_check
        %p143 = pneg %p78
      $region18: #{dqn_forward.4} parent=11 // pred_check_branch
        %145 = sbr.rel (%p143) target = $region20
      $region19: #{dqn_forward.4} parent=11 // pred_region
        _
      $region20: #{dqn_forward.4} parent=11 // pred_fallthru
        _
      // Predicated region
      $region21: #{dqn_forward.4} parent=11 // pred_check
        %p146 = pneg %p99
      $region22: #{dqn_forward.4} parent=11 // pred_check_branch
        %148 = sbr.rel (%p146) target = $region24
      $region23: #{dqn_forward.4} parent=11 // pred_region
        _
      $region24: #{dqn_forward.4} parent=11 // pred_fallthru
        _
    $region12: #{dqn_forward.4} parent=5 // pred_fallthru
      _
    %p149 = scmp.lt.s32.totalorder %s10, 6
    // Predicated region
    $region25: #{dqn_forward.4} parent=5 // pred_check
      %p150 = pneg %p149
    $region26: #{dqn_forward.4} parent=5 // pred_check_branch
      %152 = sbr.rel (%p150) target = $region28
    $region27: #{dqn_forward.4} parent=5 // pred_region
      // Predicated region
      $region29: #{dqn_forward.4} parent=27 // pred_check
        %p153 = pneg %p30
      $region30: #{dqn_forward.4} parent=27 // pred_check_branch
        %155 = sbr.rel (%p153) target = $region32
      $region31: #{dqn_forward.4} parent=27 // pred_region
        %s156 = smul.u32 32, %s10
        %p157 = scmp.lt.s32.totalorder %s156, 191
        %s158 = scalar_select %p157, %s156, 191
        %s159 = smul.addr %s158, 8
        %s160 = scalar_lea.vmem %s0, %s159
        %s161 = smul.u32 32, %s10
      $region32: #{dqn_forward.4} parent=27 // pred_fallthru
        _
    $region28: #{dqn_forward.4} parent=5 // pred_fallthru
      _
    %p162 = scmp.le.s32.totalorder 1, %s10
    %p163 = scmp.lt.s32.totalorder %s10, 7
    %p164 = pnand %p162, %p163
    %p165 = pneg %p164
    // Predicated region
    $region33: #{dqn_forward.4} parent=5 // pred_check
      _
    $region34: #{dqn_forward.4} parent=5 // pred_check_branch
      %167 = sbr.rel (%p164) target = $region36
    $region35: #{dqn_forward.4} parent=5 // pred_region
      %s168 = ssub.s32 %s10, 1
      %s169 = smul.u32 32, %s15
      %p170 = scmp.lt.s32.totalorder %s169, 191
      %s171 = scalar_select %p170, %s169, 191
      %s172 = smul.addr %s171, 8
      %s173 = scalar_lea.vmem %s0, %s172
      %p174 = pneg %p36
      %p175 = pneg %p33
      %p176 = pneg %p57
      %p177 = pneg %p54
      %p178 = pneg %p78
      %p179 = pneg %p75
      %p180 = pneg %p99
      %p181 = pneg %p96
      %p182 = pneg %p125
      %p183 = pneg %p122
      %s184 = smul.u32 32, %s15
      %p185 = scmp.lt.s32.totalorder %s184, 191
      %s186 = scalar_select %p185, %s184, 191
      %s187 = smul.addr %s186, 8
      %s188 = scalar_lea.vmem %s4, %s187
      %s189 = smul.u32 32, %s15
      %p190 = scmp.lt.s32.totalorder %s189, 191
      %s191 = scalar_select %p190, %s189, 191
      %s192 = smul.addr %s191, 8
      %s193 = scalar_lea.vmem %s0, %s192
      %s194 = smul.u32 32, %s15
      %s195 = smul.u32 32, %s15
      %p196 = scmp.lt.s32.totalorder %s195, 191
      %s197 = scalar_select %p196, %s195, 191
      %s198 = smul.addr %s197, 8
      %s199 = scalar_lea.vmem %s4, %s198
      %s200 = smul.u32 32, %s15
      %v201 = vld [vmem:[%s193] sm:$0xff]
      %v202 = vld [vmem:[%s193 + $0x8] sm:$0xff]
      %v203 = vld [vmem:[%s193 + $0x10] sm:$0xff]
      %v204 = vld [vmem:[%s193 + $0x18] sm:$0xff]
      %v205 = vld [vmem:[%s193 + $0x20] sm:$0xff]
      %v206 = vld [vmem:[%s193 + $0x28] sm:$0xff]
      %v207 = vld [vmem:[%s193 + $0x30] sm:$0xff]
      %v208 = vld [vmem:[%s193 + $0x38] sm:$0xff]
      %v209 = vld [vmem:[%s193 + $0x40] sm:$0xff]
      %v210 = vld [vmem:[%s193 + $0x48] sm:$0xff]
      %v211 = vld [vmem:[%s193 + $0x50] sm:$0xff]
      %v212 = vld [vmem:[%s193 + $0x58] sm:$0xff]
      %v213 = vld [vmem:[%s193 + $0x60] sm:$0xff]
      %v214 = vld [vmem:[%s193 + $0x68] sm:$0xff]
      %v215 = vld [vmem:[%s193 + $0x70] sm:$0xff]
      %v216 = vld [vmem:[%s193 + $0x78] sm:$0xff]
      %v217 = vld [vmem:[%s193 + $0x80] sm:$0xff]
      %v218 = vld [vmem:[%s193 + $0x88] sm:$0xff]
      %v219 = vld [vmem:[%s193 + $0x90] sm:$0xff]
      %v220 = vld [vmem:[%s193 + $0x98] sm:$0xff]
      %v221 = vld [vmem:[%s193 + $0xa0] sm:$0xff]
      %v222 = vld [vmem:[%s193 + $0xa8] sm:$0xff]
      %v223 = vld [vmem:[%s193 + $0xb0] sm:$0xff]
      %v224 = vld [vmem:[%s193 + $0xb8] sm:$0xff]
      %v225 = vld [vmem:[%s193 + $0xc0] sm:$0xff]
      %v226 = vld [vmem:[%s193 + $0xc8] sm:$0xff]
      %v227 = vld [vmem:[%s193 + $0xd0] sm:$0xff]
      %v228 = vld [vmem:[%s193 + $0xd8] sm:$0xff]
      %v229 = vld [vmem:[%s193 + $0xe0] sm:$0xff]
      %v230 = vld [vmem:[%s193 + $0xe8] sm:$0xff]
      %v231 = vld [vmem:[%s193 + $0xf0] sm:$0xff]
      %v232 = vld [vmem:[%s193 + $0xf8] sm:$0xff]
      %v233 = vld [vmem:[%s1] sm:$0xff]
      %v234 = vld [vmem:[%s1 + $0x8] sm:$0xff]
      %v235 = vld [vmem:[%s1 + $0x10] sm:$0xff]
      %v236 = vld [vmem:[%s1 + $0x18] sm:$0xff]
      %v237 = vld [vmem:[%s1 + $0x20] sm:$0xff]
      %v238 = vld [vmem:[%s1 + $0x28] sm:$0xff]
      %v239 = vld [vmem:[%s1 + $0x30] sm:$0xff]
      %v240 = vld [vmem:[%s1 + $0x38] sm:$0xff]
      %v241 = vld [vmem:[%s1 + $0x40] sm:$0xff]
      %v242 = vld [vmem:[%s1 + $0x48] sm:$0xff]
      %v243 = vld [vmem:[%s1 + $0x50] sm:$0xff]
      %v244 = vld [vmem:[%s1 + $0x58] sm:$0xff]
      %v245 = vld [vmem:[%s1 + $0x60] sm:$0xff]
      %v246 = vld [vmem:[%s1 + $0x68] sm:$0xff]
      %v247 = vld [vmem:[%s1 + $0x70] sm:$0xff]
      %v248 = vld [vmem:[%s1 + $0x78] sm:$0xff]
      %249 = vmatprep.subr.mxu0 0.0
      %250 = vmatpush1.msra.mxu0 %v233
      %251 = vmatprep.subr.mxu0 0.0
      %252 = vmatpush1.msra.mxu0 %v234
      %253 = vmatprep.subr.mxu0 0.0
      %254 = vmatpush1.msra.mxu0 %v235
      %255 = vmatprep.subr.mxu0 0.0
      %256 = vmatpush1.msra.mxu0 %v236
      %257 = vmatprep.subr.mxu0 0.0
      %258 = vmatpush1.msra.mxu0 %v237
      %259 = vmatprep.subr.mxu0 0.0
      %260 = vmatpush1.msra.mxu0 %v238
      %261 = vmatprep.subr.mxu0 0.0
      %262 = vmatpush1.msra.mxu0 %v239
      %263 = vmatprep.subr.mxu0 0.0
      %264 = vmatpush1.msra.mxu0 %v240
      %265 = vmatprep.subr.mxu0 0.0
      %266 = vmatpush1.msra.mxu0 %v241
      %267 = vmatprep.subr.mxu0 0.0
      %268 = vmatpush1.msra.mxu0 %v242
      %269 = vmatprep.subr.mxu0 0.0
      %270 = vmatpush1.msra.mxu0 %v243
      %271 = vmatprep.subr.mxu0 0.0
      %272 = vmatpush1.msra.mxu0 %v244
      %273 = vmatprep.subr.mxu0 0.0
      %274 = vmatpush1.msra.mxu0 %v245
      %275 = vmatprep.subr.mxu0 0.0
      %276 = vmatpush1.msra.mxu0 %v246
      %277 = vmatprep.subr.mxu0 0.0
      %278 = vmatpush1.msra.mxu0 %v247
      %279 = vmatprep.subr.mxu0 0.0
      %280 = vmatpush1.msra.mxu0 %v248
      %281 = vmatprep.subr.mxu0 0.0
      %282 = vmatpush1.msra.mxu0 0.0
      %283 = vmatprep.subr.mxu0 0.0
      %284 = vmatpush1.msra.mxu0 0.0
      %285 = vmatprep.subr.mxu0 0.0
      %286 = vmatpush1.msra.mxu0 0.0
      %287 = vmatprep.subr.mxu0 0.0
      %288 = vmatpush1.msra.mxu0 0.0
      %289 = vmatprep.subr.mxu0 0.0
      %290 = vmatpush1.msra.mxu0 0.0
      %291 = vmatprep.subr.mxu0 0.0
      %292 = vmatpush1.msra.mxu0 0.0
      %293 = vmatprep.subr.mxu0 0.0
      %294 = vmatpush1.msra.mxu0 0.0
      %295 = vmatprep.subr.mxu0 0.0
      %296 = vmatpush1.msra.mxu0 0.0
      %297 = vmatprep.subr.mxu0 0.0
      %298 = vmatpush1.msra.mxu0 0.0
      %299 = vmatprep.subr.mxu0 0.0
      %300 = vmatpush1.msra.mxu0 0.0
      %301 = vmatprep.subr.mxu0 0.0
      %302 = vmatpush1.msra.mxu0 0.0
      %303 = vmatprep.subr.mxu0 0.0
      %304 = vmatpush1.msra.mxu0 0.0
      %305 = vmatprep.subr.mxu0 0.0
      %306 = vmatpush1.msra.mxu0 0.0
      %307 = vmatprep.subr.mxu0 0.0
      %308 = vmatpush1.msra.mxu0 0.0
      %309 = vmatprep.subr.mxu0 0.0
      %310 = vmatpush1.msra.mxu0 0.0
      %311 = vmatprep.subr.mxu0 0.0
      %312 = vmatpush1.msra.mxu0 0.0
      %313 = vmatprep.mubr.f32.mxu0 0.0
      %314 = vmatmul.mubr.f32.gmra.mrb[0].mxu0 %v201
      %v315 = vpop.f32.mrb[0].mxu0
      %v316 = vadd.f32 0.0, %v315
      %v317 = vpop.f32.mrb[0].mxu0
      %318 = vmatprep.mubr.f32.mxu0 0.0
      %319 = vmatmul.mubr.f32.gmra.mrb[0].mxu0 %v202
      %v320 = vpop.f32.mrb[0].mxu0
      %v321 = vadd.f32 0.0, %v320
      %v322 = vpop.f32.mrb[0].mxu0
      %323 = vmatprep.mubr.f32.mxu0 0.0
      %324 = vmatmul.mubr.f32.gmra.mrb[0].mxu0 %v203
      %v325 = vpop.f32.mrb[0].mxu0
      %v326 = vadd.f32 0.0, %v325
      %v327 = vpop.f32.mrb[0].mxu0
      %328 = vmatprep.mubr.f32.mxu0 0.0
      %329 = vmatmul.mubr.f32.gmra.mrb[0].mxu0 %v204
      %v330 = vpop.f32.mrb[0].mxu0
      %v331 = vadd.f32 0.0, %v330
      %v332 = vpop.f32.mrb[0].mxu0
      %333 = vmatprep.mubr.f32.mxu0 0.0
      %334 = vmatmul.mubr.f32.gmra.mrb[0].mxu0 %v205
      %v335 = vpop.f32.mrb[0].mxu0
      %v336 = vadd.f32 0.0, %v335
      %v337 = vpop.f32.mrb[0].mxu0
      %338 = vmatprep.mubr.f32.mxu0 0.0
      %339 = vmatmul.mubr.f32.gmra.mrb[0].mxu0 %v206
      %v340 = vpop.f32.mrb[0].mxu0
      %v341 = vadd.f32 0.0, %v340
      %v342 = vpop.f32.mrb[0].mxu0
      %343 = vmatprep.mubr.f32.mxu0 0.0
      %344 = vmatmul.mubr.f32.gmra.mrb[0].mxu0 %v207
      %v345 = vpop.f32.mrb[0].mxu0
      %v346 = vadd.f32 0.0, %v345
      %v347 = vpop.f32.mrb[0].mxu0
      %348 = vmatprep.mubr.f32.mxu0 0.0
      %349 = vmatmul.mubr.f32.gmra.mrb[0].mxu0 %v208
      %v350 = vpop.f32.mrb[0].mxu0
      %v351 = vadd.f32 0.0, %v350
      %v352 = vpop.f32.mrb[0].mxu0
      %353 = vmatprep.mubr.f32.mxu0 0.0
      %354 = vmatmul.mubr.f32.gmra.mrb[0].mxu0 %v209
      %v355 = vpop.f32.mrb[0].mxu0
      %v356 = vadd.f32 0.0, %v355
      %v357 = vpop.f32.mrb[0].mxu0
      %358 = vmatprep.mubr.f32.mxu0 0.0
      %359 = vmatmul.mubr.f32.gmra.mrb[0].mxu0 %v210
      %v360 = vpop.f32.mrb[0].mxu0
      %v361 = vadd.f32 0.0, %v360
      %v362 = vpop.f32.mrb[0].mxu0
      %363 = vmatprep.mubr.f32.mxu0 0.0
      %364 = vmatmul.mubr.f32.gmra.mrb[0].mxu0 %v211
      %v365 = vpop.f32.mrb[0].mxu0
      %v366 = vadd.f32 0.0, %v365
      %v367 = vpop.f32.mrb[0].mxu0
      %368 = vmatprep.mubr.f32.mxu0 0.0
      %369 = vmatmul.mubr.f32.gmra.mrb[0].mxu0 %v212
      %v370 = vpop.f32.mrb[0].mxu0
      %v371 = vadd.f32 0.0, %v370
      %v372 = vpop.f32.mrb[0].mxu0
      %373 = vmatprep.mubr.f32.mxu0 0.0
      %374 = vmatmul.mubr.f32.gmra.mrb[0].mxu0 %v213
      %v375 = vpop.f32.mrb[0].mxu0
      %v376 = vadd.f32 0.0, %v375
      %v377 = vpop.f32.mrb[0].mxu0
      %378 = vmatprep.mubr.f32.mxu0 0.0
      %379 = vmatmul.mubr.f32.gmra.mrb[0].mxu0 %v214
      %v380 = vpop.f32.mrb[0].mxu0
      %v381 = vadd.f32 0.0, %v380
      %v382 = vpop.f32.mrb[0].mxu0
      %383 = vmatprep.mubr.f32.mxu0 0.0
      %384 = vmatmul.mubr.f32.gmra.mrb[0].mxu0 %v215
      %v385 = vpop.f32.mrb[0].mxu0
      %v386 = vadd.f32 0.0, %v385
      %v387 = vpop.f32.mrb[0].mxu0
      %388 = vmatprep.mubr.f32.mxu0 0.0
      %389 = vmatmul.mubr.f32.gmra.mrb[0].mxu0 %v216
      %v390 = vpop.f32.mrb[0].mxu0
      %v391 = vadd.f32 0.0, %v390
      %v392 = vpop.f32.mrb[0].mxu0
      %393 = vmatprep.mubr.f32.mxu0 0.0
      %394 = vmatmul.mubr.f32.gmra.mrb[0].mxu0 %v217
      %v395 = vpop.f32.mrb[0].mxu0
      %v396 = vadd.f32 0.0, %v395
      %v397 = vpop.f32.mrb[0].mxu0
      %398 = vmatprep.mubr.f32.mxu0 0.0
      %399 = vmatmul.mubr.f32.gmra.mrb[0].mxu0 %v218
      %v400 = vpop.f32.mrb[0].mxu0
      %v401 = vadd.f32 0.0, %v400
      %v402 = vpop.f32.mrb[0].mxu0
      %403 = vmatprep.mubr.f32.mxu0 0.0
      %404 = vmatmul.mubr.f32.gmra.mrb[0].mxu0 %v219
      %v405 = vpop.f32.mrb[0].mxu0
      %v406 = vadd.f32 0.0, %v405
      %v407 = vpop.f32.mrb[0].mxu0
      %408 = vmatprep.mubr.f32.mxu0 0.0
      %409 = vmatmul.mubr.f32.gmra.mrb[0].mxu0 %v220
      %v410 = vpop.f32.mrb[0].mxu0
      %v411 = vadd.f32 0.0, %v410
      %v412 = vpop.f32.mrb[0].mxu0
      %413 = vmatprep.mubr.f32.mxu0 0.0
      %414 = vmatmul.mubr.f32.gmra.mrb[0].mxu0 %v221
      %v415 = vpop.f32.mrb[0].mxu0
      %v416 = vadd.f32 0.0, %v415
      %v417 = vpop.f32.mrb[0].mxu0
      %418 = vmatprep.mubr.f32.mxu0 0.0
      %419 = vmatmul.mubr.f32.gmra.mrb[0].mxu0 %v222
      %v420 = vpop.f32.mrb[0].mxu0
      %v421 = vadd.f32 0.0, %v420
      %v422 = vpop.f32.mrb[0].mxu0
      %423 = vmatprep.mubr.f32.mxu0 0.0
      %424 = vmatmul.mubr.f32.gmra.mrb[0].mxu0 %v223
      %v425 = vpop.f32.mrb[0].mxu0
      %v426 = vadd.f32 0.0, %v425
      %v427 = vpop.f32.mrb[0].mxu0
      %428 = vmatprep.mubr.f32.mxu0 0.0
      %429 = vmatmul.mubr.f32.gmra.mrb[0].mxu0 %v224
      %v430 = vpop.f32.mrb[0].mxu0
      %v431 = vadd.f32 0.0, %v430
      %v432 = vpop.f32.mrb[0].mxu0
      %433 = vmatprep.mubr.f32.mxu0 0.0
      %434 = vmatmul.mubr.f32.gmra.mrb[0].mxu0 %v225
      %v435 = vpop.f32.mrb[0].mxu0
      %v436 = vadd.f32 0.0, %v435
      %v437 = vpop.f32.mrb[0].mxu0
      %438 = vmatprep.mubr.f32.mxu0 0.0
      %439 = vmatmul.mubr.f32.gmra.mrb[0].mxu0 %v226
      %v440 = vpop.f32.mrb[0].mxu0
      %v441 = vadd.f32 0.0, %v440
      %v442 = vpop.f32.mrb[0].mxu0
      %443 = vmatprep.mubr.f32.mxu0 0.0
      %444 = vmatmul.mubr.f32.gmra.mrb[0].mxu0 %v227
      %v445 = vpop.f32.mrb[0].mxu0
      %v446 = vadd.f32 0.0, %v445
      %v447 = vpop.f32.mrb[0].mxu0
      %448 = vmatprep.mubr.f32.mxu0 0.0
      %449 = vmatmul.mubr.f32.gmra.mrb[0].mxu0 %v228
      %v450 = vpop.f32.mrb[0].mxu0
      %v451 = vadd.f32 0.0, %v450
      %v452 = vpop.f32.mrb[0].mxu0
      %453 = vmatprep.mubr.f32.mxu0 0.0
      %454 = vmatmul.mubr.f32.gmra.mrb[0].mxu0 %v229
      %v455 = vpop.f32.mrb[0].mxu0
      %v456 = vadd.f32 0.0, %v455
      %v457 = vpop.f32.mrb[0].mxu0
      %458 = vmatprep.mubr.f32.mxu0 0.0
      %459 = vmatmul.mubr.f32.gmra.mrb[0].mxu0 %v230
      %v460 = vpop.f32.mrb[0].mxu0
      %v461 = vadd.f32 0.0, %v460
      %v462 = vpop.f32.mrb[0].mxu0
      %463 = vmatprep.mubr.f32.mxu0 0.0
      %464 = vmatmul.mubr.f32.gmra.mrb[0].mxu0 %v231
      %v465 = vpop.f32.mrb[0].mxu0
      %v466 = vadd.f32 0.0, %v465
      %v467 = vpop.f32.mrb[0].mxu0
      %468 = vmatprep.mubr.f32.mxu0 0.0
      %469 = vmatmul.mubr.f32.gmra.mrb[0].mxu0 %v232
      %v470 = vpop.f32.mrb[0].mxu0
      %v471 = vadd.f32 0.0, %v470
      %v472 = vpop.f32.mrb[0].mxu0
      %473 = vdwg.mxu0
      %v474 = vld [vmem:[%s2] sm:$0x1]
      %v476 = vlaneseq
      %v477 = vshrl.u32 %v476, 7
      %v478 = vsub.s32 0, %v477
      %v479 = vrot.slane %v474, %v478
      %v481 = vmul.f32 %v316, %v479
      %v482 = vmul.f32 %v321, %v479
      %v483 = vmul.f32 %v326, %v479
      %v484 = vmul.f32 %v331, %v479
      %v485 = vmul.f32 %v336, %v479
      %v486 = vmul.f32 %v341, %v479
      %v487 = vmul.f32 %v346, %v479
      %v488 = vmul.f32 %v351, %v479
      %v489 = vmul.f32 %v356, %v479
      %v490 = vmul.f32 %v361, %v479
      %v491 = vmul.f32 %v366, %v479
      %v492 = vmul.f32 %v371, %v479
      %v493 = vmul.f32 %v376, %v479
      %v494 = vmul.f32 %v381, %v479
      %v495 = vmul.f32 %v386, %v479
      %v496 = vmul.f32 %v391, %v479
      %v497 = vmul.f32 %v396, %v479
      %v498 = vmul.f32 %v401, %v479
      %v499 = vmul.f32 %v406, %v479
      %v500 = vmul.f32 %v411, %v479
      %v501 = vmul.f32 %v416, %v479
      %v502 = vmul.f32 %v421, %v479
      %v503 = vmul.f32 %v426, %v479
      %v504 = vmul.f32 %v431, %v479
      %v505 = vmul.f32 %v436, %v479
      %v506 = vmul.f32 %v441, %v479
      %v507 = vmul.f32 %v446, %v479
      %v508 = vmul.f32 %v451, %v479
      %v509 = vmul.f32 %v456, %v479
      %v510 = vmul.f32 %v461, %v479
      %v511 = vmul.f32 %v466, %v479
      %v512 = vmul.f32 %v471, %v479
      %v513 = vld [vmem:[%s3] sm:$0x1]
      %v515 = vlaneseq
      %v516 = vshrl.u32 %v515, 7
      %v517 = vsub.s32 0, %v516
      %v518 = vrot.slane %v513, %v517
      %v520 = vadd.f32 %v481, %v518
      %v521 = vadd.f32 %v482, %v518
      %v522 = vadd.f32 %v483, %v518
      %v523 = vadd.f32 %v484, %v518
      %v524 = vadd.f32 %v485, %v518
      %v525 = vadd.f32 %v486, %v518
      %v526 = vadd.f32 %v487, %v518
      %v527 = vadd.f32 %v488, %v518
      %v528 = vadd.f32 %v489, %v518
      %v529 = vadd.f32 %v490, %v518
      %v530 = vadd.f32 %v491, %v518
      %v531 = vadd.f32 %v492, %v518
      %v532 = vadd.f32 %v493, %v518
      %v533 = vadd.f32 %v494, %v518
      %v534 = vadd.f32 %v495, %v518
      %v535 = vadd.f32 %v496, %v518
      %v536 = vadd.f32 %v497, %v518
      %v537 = vadd.f32 %v498, %v518
      %v538 = vadd.f32 %v499, %v518
      %v539 = vadd.f32 %v500, %v518
      %v540 = vadd.f32 %v501, %v518
      %v541 = vadd.f32 %v502, %v518
      %v542 = vadd.f32 %v503, %v518
      %v543 = vadd.f32 %v504, %v518
      %v544 = vadd.f32 %v505, %v518
      %v545 = vadd.f32 %v506, %v518
      %v546 = vadd.f32 %v507, %v518
      %v547 = vadd.f32 %v508, %v518
      %v548 = vadd.f32 %v509, %v518
      %v549 = vadd.f32 %v510, %v518
      %v550 = vadd.f32 %v511, %v518
      %v551 = vadd.f32 %v512, %v518
      %v552 = vmax.f32 %v520, 0.0
      %v553 = vmax.f32 %v521, 0.0
      %v554 = vmax.f32 %v522, 0.0
      %v555 = vmax.f32 %v523, 0.0
      %v556 = vmax.f32 %v524, 0.0
      %v557 = vmax.f32 %v525, 0.0
      %v558 = vmax.f32 %v526, 0.0
      %v559 = vmax.f32 %v527, 0.0
      %v560 = vmax.f32 %v528, 0.0
      %v561 = vmax.f32 %v529, 0.0
      %v562 = vmax.f32 %v530, 0.0
      %v563 = vmax.f32 %v531, 0.0
      %v564 = vmax.f32 %v532, 0.0
      %v565 = vmax.f32 %v533, 0.0
      %v566 = vmax.f32 %v534, 0.0
      %v567 = vmax.f32 %v535, 0.0
      %v568 = vmax.f32 %v536, 0.0
      %v569 = vmax.f32 %v537, 0.0
      %v570 = vmax.f32 %v538, 0.0
      %v571 = vmax.f32 %v539, 0.0
      %v572 = vmax.f32 %v540, 0.0
      %v573 = vmax.f32 %v541, 0.0
      %v574 = vmax.f32 %v542, 0.0
      %v575 = vmax.f32 %v543, 0.0
      %v576 = vmax.f32 %v544, 0.0
      %v577 = vmax.f32 %v545, 0.0
      %v578 = vmax.f32 %v546, 0.0
      %v579 = vmax.f32 %v547, 0.0
      %v580 = vmax.f32 %v548, 0.0
      %v581 = vmax.f32 %v549, 0.0
      %v582 = vmax.f32 %v550, 0.0
      %v583 = vmax.f32 %v551, 0.0
      %vm584 = vcmask 130048
      %585 = vst.msk [vmem:[%s199] sm:$0xff] %vm584, %v552
      %586 = vst.msk [vmem:[%s199 + $0x8] sm:$0xff] %vm584, %v553
      %587 = vst.msk [vmem:[%s199 + $0x10] sm:$0xff] %vm584, %v554
      %588 = vst.msk [vmem:[%s199 + $0x18] sm:$0xff] %vm584, %v555
      %589 = vst.msk [vmem:[%s199 + $0x20] sm:$0xff] %vm584, %v556
      %590 = vst.msk [vmem:[%s199 + $0x28] sm:$0xff] %vm584, %v557
      %591 = vst.msk [vmem:[%s199 + $0x30] sm:$0xff] %vm584, %v558
      %592 = vst.msk [vmem:[%s199 + $0x38] sm:$0xff] %vm584, %v559
      %593 = vst.msk [vmem:[%s199 + $0x40] sm:$0xff] %vm584, %v560
      %594 = vst.msk [vmem:[%s199 + $0x48] sm:$0xff] %vm584, %v561
      %595 = vst.msk [vmem:[%s199 + $0x50] sm:$0xff] %vm584, %v562
      %596 = vst.msk [vmem:[%s199 + $0x58] sm:$0xff] %vm584, %v563
      %597 = vst.msk [vmem:[%s199 + $0x60] sm:$0xff] %vm584, %v564
      %598 = vst.msk [vmem:[%s199 + $0x68] sm:$0xff] %vm584, %v565
      %599 = vst.msk [vmem:[%s199 + $0x70] sm:$0xff] %vm584, %v566
      %600 = vst.msk [vmem:[%s199 + $0x78] sm:$0xff] %vm584, %v567
      %601 = vst.msk [vmem:[%s199 + $0x80] sm:$0xff] %vm584, %v568
      %602 = vst.msk [vmem:[%s199 + $0x88] sm:$0xff] %vm584, %v569
      %603 = vst.msk [vmem:[%s199 + $0x90] sm:$0xff] %vm584, %v570
      %604 = vst.msk [vmem:[%s199 + $0x98] sm:$0xff] %vm584, %v571
      %605 = vst.msk [vmem:[%s199 + $0xa0] sm:$0xff] %vm584, %v572
      %606 = vst.msk [vmem:[%s199 + $0xa8] sm:$0xff] %vm584, %v573
      %607 = vst.msk [vmem:[%s199 + $0xb0] sm:$0xff] %vm584, %v574
      %608 = vst.msk [vmem:[%s199 + $0xb8] sm:$0xff] %vm584, %v575
      %609 = vst.msk [vmem:[%s199 + $0xc0] sm:$0xff] %vm584, %v576
      %610 = vst.msk [vmem:[%s199 + $0xc8] sm:$0xff] %vm584, %v577
      %611 = vst.msk [vmem:[%s199 + $0xd0] sm:$0xff] %vm584, %v578
      %612 = vst.msk [vmem:[%s199 + $0xd8] sm:$0xff] %vm584, %v579
      %613 = vst.msk [vmem:[%s199 + $0xe0] sm:$0xff] %vm584, %v580
      %614 = vst.msk [vmem:[%s199 + $0xe8] sm:$0xff] %vm584, %v581
      %615 = vst.msk [vmem:[%s199 + $0xf0] sm:$0xff] %vm584, %v582
      %616 = vst.msk [vmem:[%s199 + $0xf8] sm:$0xff] %vm584, %v583
      %s617 = smul.u32 32, %s15
      %p618 = scmp.lt.s32.totalorder %s617, 191
      %s619 = scalar_select %p618, %s617, 191
      %s620 = smul.addr %s619, 8
      %s621 = scalar_lea.vmem %s4, %s620
      // Predicated region
      $region37: #{dqn_forward.4} parent=35 // pred_check
        %p622 = pneg %p122
      $region38: #{dqn_forward.4} parent=35 // pred_check_branch
        %624 = sbr.rel (%p622) target = $region40
      $region39: #{dqn_forward.4} parent=35 // pred_region
        %s625 = smul.u32 32, %s15
      $region40: #{dqn_forward.4} parent=35 // pred_fallthru
        _
    $region36: #{dqn_forward.4} parent=5 // pred_fallthru
      _
    %p626 = scmp.le.s32.totalorder 2, %s10
    // Predicated region
    $region41: #{dqn_forward.4} parent=5 // pred_check
      %p627 = pneg %p626
    $region42: #{dqn_forward.4} parent=5 // pred_check_branch
      %629 = sbr.rel (%p627) target = $region44
    $region43: #{dqn_forward.4} parent=5 // pred_region
      %s630 = ssub.s32 %s10, 2
      // Predicated region
      $region45: #{dqn_forward.4} parent=43 // pred_check
        %p631 = pneg %p128
      $region46: #{dqn_forward.4} parent=43 // pred_check_branch
        %633 = sbr.rel (%p631) target = $region48
      $region47: #{dqn_forward.4} parent=43 // pred_region
        %s634 = smul.u32 32, %s16
        %p635 = scmp.lt.s32.totalorder %s634, 191
        %s636 = scalar_select %p635, %s634, 191
        %s637 = smul.addr %s636, 8
        %s638 = scalar_lea.vmem %s4, %s637
      $region48: #{dqn_forward.4} parent=43 // pred_fallthru
        _
    $region44: #{dqn_forward.4} parent=5 // pred_fallthru
      _
  $region6: #{dqn_forward.4} parent=0 // loop_footer
    %s14 = sadd.s32 1, %s10
  $region7: #{dqn_forward.4} parent=0 // loop_footer_branch
    %9 = sbr.rel target = $region3
  $region8: #{dqn_forward.4} parent=0 // loop_exit
    _

// kernel: dqn_forward.5
$region0: #{dqn_forward.5}
  #allocation0 [shape = 'u32[]', space=smem, size = 0x4, offset = 0x4, fixed_abs, tag = 'smem constant byte address 0x4 - core index']
  #allocation1 [shape = 'u32[144,128]{1,0:T(1,128)}', space=vmem, size = 0x12000, scoped, tag = 'internal scratch']
  %s0 = inlined_call_operand.vmem [shape: f32[240,512], index: 0, kind: input, shape index: {}]
  %s1 = inlined_call_operand.vmem [shape: f32[512,32], index: 1, kind: input, shape index: {}]
  %s2 = inlined_call_operand.vmem [shape: f32[1,32], index: 2, kind: input, shape index: {}]
  %s3 = inlined_call_operand.vmem [shape: f32[1,32], index: 3, kind: input, shape index: {}]
  %s4 = inlined_call_operand.vmem [shape: f32[240,32], index: 4, kind: output, shape index: {}]
  %s5 = sld [smem:[#allocation0]]
  $region26: #{dqn_forward.5} parent=0
    _
  %s7 = ssub.s32 1, %s5
  %s8 = scalar_select 0, %s7, %s5
  // Predicated region
  $region2: #{dqn_forward.5} parent=0 // pred_check
    _
  $region3: #{dqn_forward.5} parent=0 // pred_check_branch
    %10 = sbr.rel (0) target = $region5
  $region4: #{dqn_forward.5} parent=0 // pred_region
    _
  $region5: #{dqn_forward.5} parent=0 // pred_fallthru
    _
  // Predicated region
  $region6: #{dqn_forward.5} parent=0 // pred_check
    _
  $region7: #{dqn_forward.5} parent=0 // pred_check_branch
    %12 = sbr.rel (0) target = $region9
  $region8: #{dqn_forward.5} parent=0 // pred_region
    _
  $region9: #{dqn_forward.5} parent=0 // pred_fallthru
    _
  // Predicated region
  $region10: #{dqn_forward.5} parent=0 // pred_check
    _
  $region11: #{dqn_forward.5} parent=0 // pred_check_branch
    %14 = sbr.rel (0) target = $region13
  $region12: #{dqn_forward.5} parent=0 // pred_region
    _
  $region13: #{dqn_forward.5} parent=0 // pred_fallthru
    _
  // Predicated region
  $region14: #{dqn_forward.5} parent=0 // pred_check
    _
  $region15: #{dqn_forward.5} parent=0 // pred_check_branch
    %16 = sbr.rel (0) target = $region17
  $region16: #{dqn_forward.5} parent=0 // pred_region
    _
  $region17: #{dqn_forward.5} parent=0 // pred_fallthru
    _
  %v17 = vld [vmem:[%s0] sm:$0xff]
  %v18 = vld [vmem:[%s0 + $0x8] sm:$0xff]
  %v19 = vld [vmem:[%s0 + $0x10] sm:$0xff]
  %v20 = vld [vmem:[%s0 + $0x18] sm:$0xff]
  %v21 = vld [vmem:[%s0 + $0x20] sm:$0xff]
  %v22 = vld [vmem:[%s0 + $0x28] sm:$0xff]
  %v23 = vld [vmem:[%s0 + $0x30] sm:$0xff]
  %v24 = vld [vmem:[%s0 + $0x38] sm:$0xff]
  %v25 = vld [vmem:[%s0 + $0x40] sm:$0xff]
  %v26 = vld [vmem:[%s0 + $0x48] sm:$0xff]
  %v27 = vld [vmem:[%s0 + $0x50] sm:$0xff]
  %v28 = vld [vmem:[%s0 + $0x58] sm:$0xff]
  %v29 = vld [vmem:[%s0 + $0x60] sm:$0xff]
  %v30 = vld [vmem:[%s0 + $0x68] sm:$0xff]
  %v31 = vld [vmem:[%s0 + $0x70] sm:$0xff]
  %v32 = vld [vmem:[%s0 + $0x78] sm:$0xff]
  %v33 = vld [vmem:[%s0 + $0x80] sm:$0xff]
  %v34 = vld [vmem:[%s0 + $0x88] sm:$0xff]
  %v35 = vld [vmem:[%s0 + $0x90] sm:$0xff]
  %v36 = vld [vmem:[%s0 + $0x98] sm:$0xff]
  %v37 = vld [vmem:[%s0 + $0xa0] sm:$0xff]
  %v38 = vld [vmem:[%s0 + $0xa8] sm:$0xff]
  %v39 = vld [vmem:[%s0 + $0xb0] sm:$0xff]
  %v40 = vld [vmem:[%s0 + $0xb8] sm:$0xff]
  %v41 = vld [vmem:[%s0 + $0xc0] sm:$0xff]
  %v42 = vld [vmem:[%s0 + $0xc8] sm:$0xff]
  %v43 = vld [vmem:[%s0 + $0xd0] sm:$0xff]
  %v44 = vld [vmem:[%s0 + $0xd8] sm:$0xff]
  %v45 = vld [vmem:[%s0 + $0xe0] sm:$0xff]
  %v46 = vld [vmem:[%s0 + $0xe8] sm:$0xff]
  %v47 = vld [vmem:[%s0 + $0xf0] sm:$0xff]
  %v48 = vld [vmem:[%s0 + $0xf8] sm:$0xff]
  %v49 = vld [vmem:[%s0 + $0x100] sm:$0xff]
  %v50 = vld [vmem:[%s0 + $0x108] sm:$0xff]
  %v51 = vld [vmem:[%s0 + $0x110] sm:$0xff]
  %v52 = vld [vmem:[%s0 + $0x118] sm:$0xff]
  %v53 = vld [vmem:[%s0 + $0x120] sm:$0xff]
  %v54 = vld [vmem:[%s0 + $0x128] sm:$0xff]
  %v55 = vld [vmem:[%s0 + $0x130] sm:$0xff]
  %v56 = vld [vmem:[%s0 + $0x138] sm:$0xff]
  %v57 = vld [vmem:[%s0 + $0x140] sm:$0xff]
  %v58 = vld [vmem:[%s0 + $0x148] sm:$0xff]
  %v59 = vld [vmem:[%s0 + $0x150] sm:$0xff]
  %v60 = vld [vmem:[%s0 + $0x158] sm:$0xff]
  %v61 = vld [vmem:[%s0 + $0x160] sm:$0xff]
  %v62 = vld [vmem:[%s0 + $0x168] sm:$0xff]
  %v63 = vld [vmem:[%s0 + $0x170] sm:$0xff]
  %v64 = vld [vmem:[%s0 + $0x178] sm:$0xff]
  %v65 = vld [vmem:[%s0 + $0x180] sm:$0xff]
  %v66 = vld [vmem:[%s0 + $0x188] sm:$0xff]
  %v67 = vld [vmem:[%s0 + $0x190] sm:$0xff]
  %v68 = vld [vmem:[%s0 + $0x198] sm:$0xff]
  %v69 = vld [vmem:[%s0 + $0x1a0] sm:$0xff]
  %v70 = vld [vmem:[%s0 + $0x1a8] sm:$0xff]
  %v71 = vld [vmem:[%s0 + $0x1b0] sm:$0xff]
  %v72 = vld [vmem:[%s0 + $0x1b8] sm:$0xff]
  %v73 = vld [vmem:[%s0 + $0x1c0] sm:$0xff]
  %v74 = vld [vmem:[%s0 + $0x1c8] sm:$0xff]
  %v75 = vld [vmem:[%s0 + $0x1d0] sm:$0xff]
  %v76 = vld [vmem:[%s0 + $0x1d8] sm:$0xff]
  %v77 = vld [vmem:[%s0 + $0x1e0] sm:$0xff]
  %v78 = vld [vmem:[%s0 + $0x1e8] sm:$0xff]
  %v79 = vld [vmem:[%s0 + $0x1f0] sm:$0xff]
  %v80 = vld [vmem:[%s0 + $0x1f8] sm:$0xff]
  %v81 = vld [vmem:[%s0 + $0x200] sm:$0xff]
  %v82 = vld [vmem:[%s0 + $0x208] sm:$0xff]
  %v83 = vld [vmem:[%s0 + $0x210] sm:$0xff]
  %v84 = vld [vmem:[%s0 + $0x218] sm:$0xff]
  %v85 = vld [vmem:[%s0 + $0x220] sm:$0xff]
  %v86 = vld [vmem:[%s0 + $0x228] sm:$0xff]
  %v87 = vld [vmem:[%s0 + $0x230] sm:$0xff]
  %v88 = vld [vmem:[%s0 + $0x238] sm:$0xff]
  %v89 = vld [vmem:[%s0 + $0x240] sm:$0xff]
  %v90 = vld [vmem:[%s0 + $0x248] sm:$0xff]
  %v91 = vld [vmem:[%s0 + $0x250] sm:$0xff]
  %v92 = vld [vmem:[%s0 + $0x258] sm:$0xff]
  %v93 = vld [vmem:[%s0 + $0x260] sm:$0xff]
  %v94 = vld [vmem:[%s0 + $0x268] sm:$0xff]
  %v95 = vld [vmem:[%s0 + $0x270] sm:$0xff]
  %v96 = vld [vmem:[%s0 + $0x278] sm:$0xff]
  %v97 = vld [vmem:[%s0 + $0x280] sm:$0xff]
  %v98 = vld [vmem:[%s0 + $0x288] sm:$0xff]
  %v99 = vld [vmem:[%s0 + $0x290] sm:$0xff]
  %v100 = vld [vmem:[%s0 + $0x298] sm:$0xff]
  %v101 = vld [vmem:[%s0 + $0x2a0] sm:$0xff]
  %v102 = vld [vmem:[%s0 + $0x2a8] sm:$0xff]
  %v103 = vld [vmem:[%s0 + $0x2b0] sm:$0xff]
  %v104 = vld [vmem:[%s0 + $0x2b8] sm:$0xff]
  %v105 = vld [vmem:[%s0 + $0x2c0] sm:$0xff]
  %v106 = vld [vmem:[%s0 + $0x2c8] sm:$0xff]
  %v107 = vld [vmem:[%s0 + $0x2d0] sm:$0xff]
  %v108 = vld [vmem:[%s0 + $0x2d8] sm:$0xff]
  %v109 = vld [vmem:[%s0 + $0x2e0] sm:$0xff]
  %v110 = vld [vmem:[%s0 + $0x2e8] sm:$0xff]
  %v111 = vld [vmem:[%s0 + $0x2f0] sm:$0xff]
  %v112 = vld [vmem:[%s0 + $0x2f8] sm:$0xff]
  %v113 = vld [vmem:[%s0 + $0x300] sm:$0xff]
  %v114 = vld [vmem:[%s0 + $0x308] sm:$0xff]
  %v115 = vld [vmem:[%s0 + $0x310] sm:$0xff]
  %v116 = vld [vmem:[%s0 + $0x318] sm:$0xff]
  %v117 = vld [vmem:[%s0 + $0x320] sm:$0xff]
  %v118 = vld [vmem:[%s0 + $0x328] sm:$0xff]
  %v119 = vld [vmem:[%s0 + $0x330] sm:$0xff]
  %v120 = vld [vmem:[%s0 + $0x338] sm:$0xff]
  %v121 = vld [vmem:[%s0 + $0x340] sm:$0xff]
  %v122 = vld [vmem:[%s0 + $0x348] sm:$0xff]
  %v123 = vld [vmem:[%s0 + $0x350] sm:$0xff]
  %v124 = vld [vmem:[%s0 + $0x358] sm:$0xff]
  %v125 = vld [vmem:[%s0 + $0x360] sm:$0xff]
  %v126 = vld [vmem:[%s0 + $0x368] sm:$0xff]
  %v127 = vld [vmem:[%s0 + $0x370] sm:$0xff]
  %v128 = vld [vmem:[%s0 + $0x378] sm:$0xff]
  %v129 = vld [vmem:[%s0 + $0x380] sm:$0xff]
  %v130 = vld [vmem:[%s0 + $0x388] sm:$0xff]
  %v131 = vld [vmem:[%s0 + $0x390] sm:$0xff]
  %v132 = vld [vmem:[%s0 + $0x398] sm:$0xff]
  %v133 = vld [vmem:[%s0 + $0x3a0] sm:$0xff]
  %v134 = vld [vmem:[%s0 + $0x3a8] sm:$0xff]
  %v135 = vld [vmem:[%s0 + $0x3b0] sm:$0xff]
  %v136 = vld [vmem:[%s0 + $0x3b8] sm:$0xff]
  %v137 = vld [vmem:[%s1] sm:$0xff]
  %v138 = vld [vmem:[%s1 + $0x8] sm:$0xff]
  %v139 = vld [vmem:[%s1 + $0x10] sm:$0xff]
  %v140 = vld [vmem:[%s1 + $0x18] sm:$0xff]
  %v141 = vld [vmem:[%s1 + $0x20] sm:$0xff]
  %v142 = vld [vmem:[%s1 + $0x28] sm:$0xff]
  %v143 = vld [vmem:[%s1 + $0x30] sm:$0xff]
  %v144 = vld [vmem:[%s1 + $0x38] sm:$0xff]
  %v145 = vld [vmem:[%s1 + $0x40] sm:$0xff]
  %v146 = vld [vmem:[%s1 + $0x48] sm:$0xff]
  %v147 = vld [vmem:[%s1 + $0x50] sm:$0xff]
  %v148 = vld [vmem:[%s1 + $0x58] sm:$0xff]
  %v149 = vld [vmem:[%s1 + $0x60] sm:$0xff]
  %v150 = vld [vmem:[%s1 + $0x68] sm:$0xff]
  %v151 = vld [vmem:[%s1 + $0x70] sm:$0xff]
  %v152 = vld [vmem:[%s1 + $0x78] sm:$0xff]
  %v153 = vld [vmem:[%s1 + $0x80] sm:$0xff]
  %v154 = vld [vmem:[%s1 + $0x88] sm:$0xff]
  %v155 = vld [vmem:[%s1 + $0x90] sm:$0xff]
  %v156 = vld [vmem:[%s1 + $0x98] sm:$0xff]
  %v157 = vld [vmem:[%s1 + $0xa0] sm:$0xff]
  %v158 = vld [vmem:[%s1 + $0xa8] sm:$0xff]
  %v159 = vld [vmem:[%s1 + $0xb0] sm:$0xff]
  %v160 = vld [vmem:[%s1 + $0xb8] sm:$0xff]
  %v161 = vld [vmem:[%s1 + $0xc0] sm:$0xff]
  %v162 = vld [vmem:[%s1 + $0xc8] sm:$0xff]
  %v163 = vld [vmem:[%s1 + $0xd0] sm:$0xff]
  %v164 = vld [vmem:[%s1 + $0xd8] sm:$0xff]
  %v165 = vld [vmem:[%s1 + $0xe0] sm:$0xff]
  %v166 = vld [vmem:[%s1 + $0xe8] sm:$0xff]
  %v167 = vld [vmem:[%s1 + $0xf0] sm:$0xff]
  %v168 = vld [vmem:[%s1 + $0xf8] sm:$0xff]
  %v169 = vld [vmem:[%s1 + $0x100] sm:$0xff]
  %v170 = vld [vmem:[%s1 + $0x108] sm:$0xff]
  %v171 = vld [vmem:[%s1 + $0x110] sm:$0xff]
  %v172 = vld [vmem:[%s1 + $0x118] sm:$0xff]
  %v173 = vld [vmem:[%s1 + $0x120] sm:$0xff]
  %v174 = vld [vmem:[%s1 + $0x128] sm:$0xff]
  %v175 = vld [vmem:[%s1 + $0x130] sm:$0xff]
  %v176 = vld [vmem:[%s1 + $0x138] sm:$0xff]
  %v177 = vld [vmem:[%s1 + $0x140] sm:$0xff]
  %v178 = vld [vmem:[%s1 + $0x148] sm:$0xff]
  %v179 = vld [vmem:[%s1 + $0x150] sm:$0xff]
  %v180 = vld [vmem:[%s1 + $0x158] sm:$0xff]
  %v181 = vld [vmem:[%s1 + $0x160] sm:$0xff]
  %v182 = vld [vmem:[%s1 + $0x168] sm:$0xff]
  %v183 = vld [vmem:[%s1 + $0x170] sm:$0xff]
  %v184 = vld [vmem:[%s1 + $0x178] sm:$0xff]
  %v185 = vld [vmem:[%s1 + $0x180] sm:$0xff]
  %v186 = vld [vmem:[%s1 + $0x188] sm:$0xff]
  %v187 = vld [vmem:[%s1 + $0x190] sm:$0xff]
  %v188 = vld [vmem:[%s1 + $0x198] sm:$0xff]
  %v189 = vld [vmem:[%s1 + $0x1a0] sm:$0xff]
  %v190 = vld [vmem:[%s1 + $0x1a8] sm:$0xff]
  %v191 = vld [vmem:[%s1 + $0x1b0] sm:$0xff]
  %v192 = vld [vmem:[%s1 + $0x1b8] sm:$0xff]
  %v193 = vld [vmem:[%s1 + $0x1c0] sm:$0xff]
  %v194 = vld [vmem:[%s1 + $0x1c8] sm:$0xff]
  %v195 = vld [vmem:[%s1 + $0x1d0] sm:$0xff]
  %v196 = vld [vmem:[%s1 + $0x1d8] sm:$0xff]
  %v197 = vld [vmem:[%s1 + $0x1e0] sm:$0xff]
  %v198 = vld [vmem:[%s1 + $0x1e8] sm:$0xff]
  %v199 = vld [vmem:[%s1 + $0x1f0] sm:$0xff]
  %v200 = vld [vmem:[%s1 + $0x1f8] sm:$0xff]
  %201 = vmatprep.subr.mxu0 0.0
  %202 = vmatpush1.msra.mxu0 %v137
  %203 = vmatprep.subr.mxu0 0.0
  %204 = vmatpush1.msra.mxu0 %v138
  %205 = vmatprep.subr.mxu0 0.0
  %206 = vmatpush1.msra.mxu0 %v139
  %207 = vmatprep.subr.mxu0 0.0
  %208 = vmatpush1.msra.mxu0 %v140
  %209 = vmatprep.subr.mxu0 0.0
  %210 = vmatpush1.msra.mxu0 %v141
  %211 = vmatprep.subr.mxu0 0.0
  %212 = vmatpush1.msra.mxu0 %v142
  %213 = vmatprep.subr.mxu0 0.0
  %214 = vmatpush1.msra.mxu0 %v143
  %215 = vmatprep.subr.mxu0 0.0
  %216 = vmatpush1.msra.mxu0 %v144
  %217 = vmatprep.subr.mxu0 0.0
  %218 = vmatpush1.msra.mxu0 %v145
  %219 = vmatprep.subr.mxu0 0.0
  %220 = vmatpush1.msra.mxu0 %v146
  %221 = vmatprep.subr.mxu0 0.0
  %222 = vmatpush1.msra.mxu0 %v147
  %223 = vmatprep.subr.mxu0 0.0
  %224 = vmatpush1.msra.mxu0 %v148
  %225 = vmatprep.subr.mxu0 0.0
  %226 = vmatpush1.msra.mxu0 %v149
  %227 = vmatprep.subr.mxu0 0.0
  %228 = vmatpush1.msra.mxu0 %v150
  %229 = vmatprep.subr.mxu0 0.0
  %230 = vmatpush1.msra.mxu0 %v151
  %231 = vmatprep.subr.mxu0 0.0
  %232 = vmatpush1.msra.mxu0 %v152
  %233 = vmatprep.subr.mxu0 0.0
  %234 = vmatpush1.msra.mxu0 %v153
  %235 = vmatprep.subr.mxu0 0.0
  %236 = vmatpush1.msra.mxu0 %v154
  %237 = vmatprep.subr.mxu0 0.0
  %238 = vmatpush1.msra.mxu0 %v155
  %239 = vmatprep.subr.mxu0 0.0
  %240 = vmatpush1.msra.mxu0 %v156
  %241 = vmatprep.subr.mxu0 0.0
  %242 = vmatpush1.msra.mxu0 %v157
  %243 = vmatprep.subr.mxu0 0.0
  %244 = vmatpush1.msra.mxu0 %v158
  %245 = vmatprep.subr.mxu0 0.0
  %246 = vmatpush1.msra.mxu0 %v159
  %247 = vmatprep.subr.mxu0 0.0
  %248 = vmatpush1.msra.mxu0 %v160
  %249 = vmatprep.subr.mxu0 0.0
  %250 = vmatpush1.msra.mxu0 %v161
  %251 = vmatprep.subr.mxu0 0.0
  %252 = vmatpush1.msra.mxu0 %v162
  %253 = vmatprep.subr.mxu0 0.0
  %254 = vmatpush1.msra.mxu0 %v163
  %255 = vmatprep.subr.mxu0 0.0
  %256 = vmatpush1.msra.mxu0 %v164
  %257 = vmatprep.subr.mxu0 0.0
  %258 = vmatpush1.msra.mxu0 %v165
  %259 = vmatprep.subr.mxu0 0.0
  %260 = vmatpush1.msra.mxu0 %v166
  %261 = vmatprep.subr.mxu0 0.0
  %262 = vmatpush1.msra.mxu0 %v167
  %263 = vmatprep.subr.mxu0 0.0
  %264 = vmatpush1.msra.mxu0 %v168
  %265 = vmatprep.mubr.f32.mxu0 %v18
  %266 = vmatmul.mubr.f32.gmra.mrb[0].mxu0 %v17
  %v267 = vpop.f32.mrb[0].mxu0
  %v268 = vadd.f32 0.0, %v267
  %v269 = vpop.f32.mrb[0].mxu0
  %270 = vmatprep.mubr.f32.mxu0 %v22
  %271 = vmatmul.mubr.f32.gmra.mrb[0].mxu0 %v21
  %v272 = vpop.f32.mrb[0].mxu0
  %v273 = vadd.f32 0.0, %v272
  %v274 = vpop.f32.mrb[0].mxu0
  %275 = vmatprep.mubr.f32.mxu0 %v26
  %276 = vmatmul.mubr.f32.gmra.mrb[0].mxu0 %v25
  %v277 = vpop.f32.mrb[0].mxu0
  %v278 = vadd.f32 0.0, %v277
  %v279 = vpop.f32.mrb[0].mxu0
  %280 = vmatprep.mubr.f32.mxu0 %v30
  %281 = vmatmul.mubr.f32.gmra.mrb[0].mxu0 %v29
  %v282 = vpop.f32.mrb[0].mxu0
  %v283 = vadd.f32 0.0, %v282
  %v284 = vpop.f32.mrb[0].mxu0
  %285 = vmatprep.mubr.f32.mxu0 %v34
  %286 = vmatmul.mubr.f32.gmra.mrb[0].mxu0 %v33
  %v287 = vpop.f32.mrb[0].mxu0
  %v288 = vadd.f32 0.0, %v287
  %v289 = vpop.f32.mrb[0].mxu0
  %290 = vmatprep.mubr.f32.mxu0 %v38
  %291 = vmatmul.mubr.f32.gmra.mrb[0].mxu0 %v37
  %v292 = vpop.f32.mrb[0].mxu0
  %v293 = vadd.f32 0.0, %v292
  %v294 = vpop.f32.mrb[0].mxu0
  %295 = vmatprep.mubr.f32.mxu0 %v42
  %296 = vmatmul.mubr.f32.gmra.mrb[0].mxu0 %v41
  %v297 = vpop.f32.mrb[0].mxu0
  %v298 = vadd.f32 0.0, %v297
  %v299 = vpop.f32.mrb[0].mxu0
  %300 = vmatprep.mubr.f32.mxu0 %v46
  %301 = vmatmul.mubr.f32.gmra.mrb[0].mxu0 %v45
  %v302 = vpop.f32.mrb[0].mxu0
  %v303 = vadd.f32 0.0, %v302
  %v304 = vpop.f32.mrb[0].mxu0
  %305 = vmatprep.mubr.f32.mxu0 %v50
  %306 = vmatmul.mubr.f32.gmra.mrb[0].mxu0 %v49
  %v307 = vpop.f32.mrb[0].mxu0
  %v308 = vadd.f32 0.0, %v307
  %v309 = vpop.f32.mrb[0].mxu0
  %310 = vmatprep.mubr.f32.mxu0 %v54
  %311 = vmatmul.mubr.f32.gmra.mrb[0].mxu0 %v53
  %v312 = vpop.f32.mrb[0].mxu0
  %v313 = vadd.f32 0.0, %v312
  %v314 = vpop.f32.mrb[0].mxu0
  %315 = vmatprep.mubr.f32.mxu0 %v58
  %316 = vmatmul.mubr.f32.gmra.mrb[0].mxu0 %v57
  %v317 = vpop.f32.mrb[0].mxu0
  %v318 = vadd.f32 0.0, %v317
  %v319 = vpop.f32.mrb[0].mxu0
  %320 = vmatprep.mubr.f32.mxu0 %v62
  %321 = vmatmul.mubr.f32.gmra.mrb[0].mxu0 %v61
  %v322 = vpop.f32.mrb[0].mxu0
  %v323 = vadd.f32 0.0, %v322
  %v324 = vpop.f32.mrb[0].mxu0
  %325 = vmatprep.mubr.f32.mxu0 %v66
  %326 = vmatmul.mubr.f32.gmra.mrb[0].mxu0 %v65
  %v327 = vpop.f32.mrb[0].mxu0
  %v328 = vadd.f32 0.0, %v327
  %v329 = vpop.f32.mrb[0].mxu0
  %330 = vmatprep.mubr.f32.mxu0 %v70
  %331 = vmatmul.mubr.f32.gmra.mrb[0].mxu0 %v69
  %v332 = vpop.f32.mrb[0].mxu0
  %v333 = vadd.f32 0.0, %v332
  %v334 = vpop.f32.mrb[0].mxu0
  %335 = vmatprep.mubr.f32.mxu0 %v74
  %336 = vmatmul.mubr.f32.gmra.mrb[0].mxu0 %v73
  %v337 = vpop.f32.mrb[0].mxu0
  %v338 = vadd.f32 0.0, %v337
  %v339 = vpop.f32.mrb[0].mxu0
  %340 = vmatprep.mubr.f32.mxu0 %v78
  %341 = vmatmul.mubr.f32.gmra.mrb[0].mxu0 %v77
  %v342 = vpop.f32.mrb[0].mxu0
  %v343 = vadd.f32 0.0, %v342
  %v344 = vpop.f32.mrb[0].mxu0
  %345 = vmatprep.mubr.f32.mxu0 %v82
  %346 = vmatmul.mubr.f32.gmra.mrb[0].mxu0 %v81
  %v347 = vpop.f32.mrb[0].mxu0
  %v348 = vadd.f32 0.0, %v347
  %v349 = vpop.f32.mrb[0].mxu0
  %350 = vmatprep.mubr.f32.mxu0 %v86
  %351 = vmatmul.mubr.f32.gmra.mrb[0].mxu0 %v85
  %v352 = vpop.f32.mrb[0].mxu0
  %v353 = vadd.f32 0.0, %v352
  %v354 = vpop.f32.mrb[0].mxu0
  %355 = vmatprep.mubr.f32.mxu0 %v90
  %356 = vmatmul.mubr.f32.gmra.mrb[0].mxu0 %v89
  %v357 = vpop.f32.mrb[0].mxu0
  %v358 = vadd.f32 0.0, %v357
  %v359 = vpop.f32.mrb[0].mxu0
  %360 = vmatprep.mubr.f32.mxu0 %v94
  %361 = vmatmul.mubr.f32.gmra.mrb[0].mxu0 %v93
  %v362 = vpop.f32.mrb[0].mxu0
  %v363 = vadd.f32 0.0, %v362
  %v364 = vpop.f32.mrb[0].mxu0
  %365 = vmatprep.mubr.f32.mxu0 %v98
  %366 = vmatmul.mubr.f32.gmra.mrb[0].mxu0 %v97
  %v367 = vpop.f32.mrb[0].mxu0
  %v368 = vadd.f32 0.0, %v367
  %v369 = vpop.f32.mrb[0].mxu0
  %370 = vmatprep.mubr.f32.mxu0 %v102
  %371 = vmatmul.mubr.f32.gmra.mrb[0].mxu0 %v101
  %v372 = vpop.f32.mrb[0].mxu0
  %v373 = vadd.f32 0.0, %v372
  %v374 = vpop.f32.mrb[0].mxu0
  %375 = vmatprep.mubr.f32.mxu0 %v106
  %376 = vmatmul.mubr.f32.gmra.mrb[0].mxu0 %v105
  %v377 = vpop.f32.mrb[0].mxu0
  %v378 = vadd.f32 0.0, %v377
  %v379 = vpop.f32.mrb[0].mxu0
  %380 = vmatprep.mubr.f32.mxu0 %v110
  %381 = vmatmul.mubr.f32.gmra.mrb[0].mxu0 %v109
  %v382 = vpop.f32.mrb[0].mxu0
  %v383 = vadd.f32 0.0, %v382
  %v384 = vpop.f32.mrb[0].mxu0
  %385 = vmatprep.mubr.f32.mxu0 %v114
  %386 = vmatmul.mubr.f32.gmra.mrb[0].mxu0 %v113
  %v387 = vpop.f32.mrb[0].mxu0
  %v388 = vadd.f32 0.0, %v387
  %v389 = vpop.f32.mrb[0].mxu0
  %390 = vmatprep.mubr.f32.mxu0 %v118
  %391 = vmatmul.mubr.f32.gmra.mrb[0].mxu0 %v117
  %v392 = vpop.f32.mrb[0].mxu0
  %v393 = vadd.f32 0.0, %v392
  %v394 = vpop.f32.mrb[0].mxu0
  %395 = vmatprep.mubr.f32.mxu0 %v122
  %396 = vmatmul.mubr.f32.gmra.mrb[0].mxu0 %v121
  %v397 = vpop.f32.mrb[0].mxu0
  %v398 = vadd.f32 0.0, %v397
  %v399 = vpop.f32.mrb[0].mxu0
  %400 = vmatprep.mubr.f32.mxu0 %v126
  %401 = vmatmul.mubr.f32.gmra.mrb[0].mxu0 %v125
  %v402 = vpop.f32.mrb[0].mxu0
  %v403 = vadd.f32 0.0, %v402
  %v404 = vpop.f32.mrb[0].mxu0
  %405 = vmatprep.mubr.f32.mxu0 %v130
  %406 = vmatmul.mubr.f32.gmra.mrb[0].mxu0 %v129
  %v407 = vpop.f32.mrb[0].mxu0
  %v408 = vadd.f32 0.0, %v407
  %v409 = vpop.f32.mrb[0].mxu0
  %410 = vmatprep.mubr.f32.mxu0 %v134
  %411 = vmatmul.mubr.f32.gmra.mrb[0].mxu0 %v133
  %v412 = vpop.f32.mrb[0].mxu0
  %v413 = vadd.f32 0.0, %v412
  %v414 = vpop.f32.mrb[0].mxu0
  %415 = vdwg.mxu0
  %416 = vmatprep.subr.mxu0 0.0
  %417 = vmatpush1.msra.mxu0 %v169
  %418 = vmatprep.subr.mxu0 0.0
  %419 = vmatpush1.msra.mxu0 %v170
  %420 = vmatprep.subr.mxu0 0.0
  %421 = vmatpush1.msra.mxu0 %v171
  %422 = vmatprep.subr.mxu0 0.0
  %423 = vmatpush1.msra.mxu0 %v172
  %424 = vmatprep.subr.mxu0 0.0
  %425 = vmatpush1.msra.mxu0 %v173
  %426 = vmatprep.subr.mxu0 0.0
  %427 = vmatpush1.msra.mxu0 %v174
  %428 = vmatprep.subr.mxu0 0.0
  %429 = vmatpush1.msra.mxu0 %v175
  %430 = vmatprep.subr.mxu0 0.0
  %431 = vmatpush1.msra.mxu0 %v176
  %432 = vmatprep.subr.mxu0 0.0
  %433 = vmatpush1.msra.mxu0 %v177
  %434 = vmatprep.subr.mxu0 0.0
  %435 = vmatpush1.msra.mxu0 %v178
  %436 = vmatprep.subr.mxu0 0.0
  %437 = vmatpush1.msra.mxu0 %v179
  %438 = vmatprep.subr.mxu0 0.0
  %439 = vmatpush1.msra.mxu0 %v180
  %440 = vmatprep.subr.mxu0 0.0
  %441 = vmatpush1.msra.mxu0 %v181
  %442 = vmatprep.subr.mxu0 0.0
  %443 = vmatpush1.msra.mxu0 %v182
  %444 = vmatprep.subr.mxu0 0.0
  %445 = vmatpush1.msra.mxu0 %v183
  %446 = vmatprep.subr.mxu0 0.0
  %447 = vmatpush1.msra.mxu0 %v184
  %448 = vmatprep.subr.mxu0 0.0
  %449 = vmatpush1.msra.mxu0 %v185
  %450 = vmatprep.subr.mxu0 0.0
  %451 = vmatpush1.msra.mxu0 %v186
  %452 = vmatprep.subr.mxu0 0.0
  %453 = vmatpush1.msra.mxu0 %v187
  %454 = vmatprep.subr.mxu0 0.0
  %455 = vmatpush1.msra.mxu0 %v188
  %456 = vmatprep.subr.mxu0 0.0
  %457 = vmatpush1.msra.mxu0 %v189
  %458 = vmatprep.subr.mxu0 0.0
  %459 = vmatpush1.msra.mxu0 %v190
  %460 = vmatprep.subr.mxu0 0.0
  %461 = vmatpush1.msra.mxu0 %v191
  %462 = vmatprep.subr.mxu0 0.0
  %463 = vmatpush1.msra.mxu0 %v192
  %464 = vmatprep.subr.mxu0 0.0
  %465 = vmatpush1.msra.mxu0 %v193
  %466 = vmatprep.subr.mxu0 0.0
  %467 = vmatpush1.msra.mxu0 %v194
  %468 = vmatprep.subr.mxu0 0.0
  %469 = vmatpush1.msra.mxu0 %v195
  %470 = vmatprep.subr.mxu0 0.0
  %471 = vmatpush1.msra.mxu0 %v196
  %472 = vmatprep.subr.mxu0 0.0
  %473 = vmatpush1.msra.mxu0 %v197
  %474 = vmatprep.subr.mxu0 0.0
  %475 = vmatpush1.msra.mxu0 %v198
  %476 = vmatprep.subr.mxu0 0.0
  %477 = vmatpush1.msra.mxu0 %v199
  %478 = vmatprep.subr.mxu0 0.0
  %479 = vmatpush1.msra.mxu0 %v200
  %480 = vmatprep.mubr.f32.mxu0 %v20
  %481 = vmatmul.mubr.f32.gmra.mrb[0].mxu0 %v19
  %v482 = vpop.f32.mrb[0].mxu0
  %v483 = vadd.f32 %v268, %v482
  %v484 = vpop.f32.mrb[0].mxu0
  %485 = vmatprep.mubr.f32.mxu0 %v24
  %486 = vmatmul.mubr.f32.gmra.mrb[0].mxu0 %v23
  %v487 = vpop.f32.mrb[0].mxu0
  %v488 = vadd.f32 %v273, %v487
  %v489 = vpop.f32.mrb[0].mxu0
  %490 = vmatprep.mubr.f32.mxu0 %v28
  %491 = vmatmul.mubr.f32.gmra.mrb[0].mxu0 %v27
  %v492 = vpop.f32.mrb[0].mxu0
  %v493 = vadd.f32 %v278, %v492
  %v494 = vpop.f32.mrb[0].mxu0
  %495 = vmatprep.mubr.f32.mxu0 %v32
  %496 = vmatmul.mubr.f32.gmra.mrb[0].mxu0 %v31
  %v497 = vpop.f32.mrb[0].mxu0
  %v498 = vadd.f32 %v283, %v497
  %v499 = vpop.f32.mrb[0].mxu0
  %500 = vmatprep.mubr.f32.mxu0 %v36
  %501 = vmatmul.mubr.f32.gmra.mrb[0].mxu0 %v35
  %v502 = vpop.f32.mrb[0].mxu0
  %v503 = vadd.f32 %v288, %v502
  %v504 = vpop.f32.mrb[0].mxu0
  %505 = vmatprep.mubr.f32.mxu0 %v40
  %506 = vmatmul.mubr.f32.gmra.mrb[0].mxu0 %v39
  %v507 = vpop.f32.mrb[0].mxu0
  %v508 = vadd.f32 %v293, %v507
  %v509 = vpop.f32.mrb[0].mxu0
  %510 = vmatprep.mubr.f32.mxu0 %v44
  %511 = vmatmul.mubr.f32.gmra.mrb[0].mxu0 %v43
  %v512 = vpop.f32.mrb[0].mxu0
  %v513 = vadd.f32 %v298, %v512
  %v514 = vpop.f32.mrb[0].mxu0
  %515 = vmatprep.mubr.f32.mxu0 %v48
  %516 = vmatmul.mubr.f32.gmra.mrb[0].mxu0 %v47
  %v517 = vpop.f32.mrb[0].mxu0
  %v518 = vadd.f32 %v303, %v517
  %v519 = vpop.f32.mrb[0].mxu0
  %520 = vmatprep.mubr.f32.mxu0 %v52
  %521 = vmatmul.mubr.f32.gmra.mrb[0].mxu0 %v51
  %v522 = vpop.f32.mrb[0].mxu0
  %v523 = vadd.f32 %v308, %v522
  %v524 = vpop.f32.mrb[0].mxu0
  %525 = vmatprep.mubr.f32.mxu0 %v56
  %526 = vmatmul.mubr.f32.gmra.mrb[0].mxu0 %v55
  %v527 = vpop.f32.mrb[0].mxu0
  %v528 = vadd.f32 %v313, %v527
  %v529 = vpop.f32.mrb[0].mxu0
  %530 = vmatprep.mubr.f32.mxu0 %v60
  %531 = vmatmul.mubr.f32.gmra.mrb[0].mxu0 %v59
  %v532 = vpop.f32.mrb[0].mxu0
  %v533 = vadd.f32 %v318, %v532
  %v534 = vpop.f32.mrb[0].mxu0
  %535 = vmatprep.mubr.f32.mxu0 %v64
  %536 = vmatmul.mubr.f32.gmra.mrb[0].mxu0 %v63
  %v537 = vpop.f32.mrb[0].mxu0
  %v538 = vadd.f32 %v323, %v537
  %v539 = vpop.f32.mrb[0].mxu0
  %540 = vmatprep.mubr.f32.mxu0 %v68
  %541 = vmatmul.mubr.f32.gmra.mrb[0].mxu0 %v67
  %v542 = vpop.f32.mrb[0].mxu0
  %v543 = vadd.f32 %v328, %v542
  %v544 = vpop.f32.mrb[0].mxu0
  %545 = vmatprep.mubr.f32.mxu0 %v72
  %546 = vmatmul.mubr.f32.gmra.mrb[0].mxu0 %v71
  %v547 = vpop.f32.mrb[0].mxu0
  %v548 = vadd.f32 %v333, %v547
  %v549 = vpop.f32.mrb[0].mxu0
  %550 = vmatprep.mubr.f32.mxu0 %v76
  %551 = vmatmul.mubr.f32.gmra.mrb[0].mxu0 %v75
  %v552 = vpop.f32.mrb[0].mxu0
  %v553 = vadd.f32 %v338, %v552
  %v554 = vpop.f32.mrb[0].mxu0
  %555 = vmatprep.mubr.f32.mxu0 %v80
  %556 = vmatmul.mubr.f32.gmra.mrb[0].mxu0 %v79
  %v557 = vpop.f32.mrb[0].mxu0
  %v558 = vadd.f32 %v343, %v557
  %v559 = vpop.f32.mrb[0].mxu0
  %560 = vmatprep.mubr.f32.mxu0 %v84
  %561 = vmatmul.mubr.f32.gmra.mrb[0].mxu0 %v83
  %v562 = vpop.f32.mrb[0].mxu0
  %v563 = vadd.f32 %v348, %v562
  %v564 = vpop.f32.mrb[0].mxu0
  %565 = vmatprep.mubr.f32.mxu0 %v88
  %566 = vmatmul.mubr.f32.gmra.mrb[0].mxu0 %v87
  %v567 = vpop.f32.mrb[0].mxu0
  %v568 = vadd.f32 %v353, %v567
  %v569 = vpop.f32.mrb[0].mxu0
  %570 = vmatprep.mubr.f32.mxu0 %v92
  %571 = vmatmul.mubr.f32.gmra.mrb[0].mxu0 %v91
  %v572 = vpop.f32.mrb[0].mxu0
  %v573 = vadd.f32 %v358, %v572
  %v574 = vpop.f32.mrb[0].mxu0
  %575 = vmatprep.mubr.f32.mxu0 %v96
  %576 = vmatmul.mubr.f32.gmra.mrb[0].mxu0 %v95
  %v577 = vpop.f32.mrb[0].mxu0
  %v578 = vadd.f32 %v363, %v577
  %v579 = vpop.f32.mrb[0].mxu0
  %580 = vmatprep.mubr.f32.mxu0 %v100
  %581 = vmatmul.mubr.f32.gmra.mrb[0].mxu0 %v99
  %v582 = vpop.f32.mrb[0].mxu0
  %v583 = vadd.f32 %v368, %v582
  %v584 = vpop.f32.mrb[0].mxu0
  %585 = vmatprep.mubr.f32.mxu0 %v104
  %586 = vmatmul.mubr.f32.gmra.mrb[0].mxu0 %v103
  %v587 = vpop.f32.mrb[0].mxu0
  %v588 = vadd.f32 %v373, %v587
  %v589 = vpop.f32.mrb[0].mxu0
  %590 = vmatprep.mubr.f32.mxu0 %v108
  %591 = vmatmul.mubr.f32.gmra.mrb[0].mxu0 %v107
  %v592 = vpop.f32.mrb[0].mxu0
  %v593 = vadd.f32 %v378, %v592
  %v594 = vpop.f32.mrb[0].mxu0
  %595 = vmatprep.mubr.f32.mxu0 %v112
  %596 = vmatmul.mubr.f32.gmra.mrb[0].mxu0 %v111
  %v597 = vpop.f32.mrb[0].mxu0
  %v598 = vadd.f32 %v383, %v597
  %v599 = vpop.f32.mrb[0].mxu0
  %600 = vmatprep.mubr.f32.mxu0 %v116
  %601 = vmatmul.mubr.f32.gmra.mrb[0].mxu0 %v115
  %v602 = vpop.f32.mrb[0].mxu0
  %v603 = vadd.f32 %v388, %v602
  %v604 = vpop.f32.mrb[0].mxu0
  %605 = vmatprep.mubr.f32.mxu0 %v120
  %606 = vmatmul.mubr.f32.gmra.mrb[0].mxu0 %v119
  %v607 = vpop.f32.mrb[0].mxu0
  %v608 = vadd.f32 %v393, %v607
  %v609 = vpop.f32.mrb[0].mxu0
  %610 = vmatprep.mubr.f32.mxu0 %v124
  %611 = vmatmul.mubr.f32.gmra.mrb[0].mxu0 %v123
  %v612 = vpop.f32.mrb[0].mxu0
  %v613 = vadd.f32 %v398, %v612
  %v614 = vpop.f32.mrb[0].mxu0
  %615 = vmatprep.mubr.f32.mxu0 %v128
  %616 = vmatmul.mubr.f32.gmra.mrb[0].mxu0 %v127
  %v617 = vpop.f32.mrb[0].mxu0
  %v618 = vadd.f32 %v403, %v617
  %v619 = vpop.f32.mrb[0].mxu0
  %620 = vmatprep.mubr.f32.mxu0 %v132
  %621 = vmatmul.mubr.f32.gmra.mrb[0].mxu0 %v131
  %v622 = vpop.f32.mrb[0].mxu0
  %v623 = vadd.f32 %v408, %v622
  %v624 = vpop.f32.mrb[0].mxu0
  %625 = vmatprep.mubr.f32.mxu0 %v136
  %626 = vmatmul.mubr.f32.gmra.mrb[0].mxu0 %v135
  %v627 = vpop.f32.mrb[0].mxu0
  %v628 = vadd.f32 %v413, %v627
  %v629 = vpop.f32.mrb[0].mxu0
  %630 = vdwg.mxu0
  %v631 = vld [vmem:[%s2] sm:$0x1]
  %v633 = vlaneseq
  %v634 = vshrl.u32 %v633, 7
  %v635 = vsub.s32 0, %v634
  %v636 = vrot.slane %v631, %v635
  %v638 = vmul.f32 %v483, %v636
  %v639 = vmul.f32 %v488, %v636
  %v640 = vmul.f32 %v493, %v636
  %v641 = vmul.f32 %v498, %v636
  %v642 = vmul.f32 %v503, %v636
  %v643 = vmul.f32 %v508, %v636
  %v644 = vmul.f32 %v513, %v636
  %v645 = vmul.f32 %v518, %v636
  %v646 = vmul.f32 %v523, %v636
  %v647 = vmul.f32 %v528, %v636
  %v648 = vmul.f32 %v533, %v636
  %v649 = vmul.f32 %v538, %v636
  %v650 = vmul.f32 %v543, %v636
  %v651 = vmul.f32 %v548, %v636
  %v652 = vmul.f32 %v553, %v636
  %v653 = vmul.f32 %v558, %v636
  %v654 = vmul.f32 %v563, %v636
  %v655 = vmul.f32 %v568, %v636
  %v656 = vmul.f32 %v573, %v636
  %v657 = vmul.f32 %v578, %v636
  %v658 = vmul.f32 %v583, %v636
  %v659 = vmul.f32 %v588, %v636
  %v660 = vmul.f32 %v593, %v636
  %v661 = vmul.f32 %v598, %v636
  %v662 = vmul.f32 %v603, %v636
  %v663 = vmul.f32 %v608, %v636
  %v664 = vmul.f32 %v613, %v636
  %v665 = vmul.f32 %v618, %v636
  %v666 = vmul.f32 %v623, %v636
  %v667 = vmul.f32 %v628, %v636
  %v668 = vld [vmem:[%s3] sm:$0x1]
  %v670 = vlaneseq
  %v671 = vshrl.u32 %v670, 7
  %v672 = vsub.s32 0, %v671
  %v673 = vrot.slane %v668, %v672
  %v675 = vadd.f32 %v638, %v673
  %v676 = vadd.f32 %v639, %v673
  %v677 = vadd.f32 %v640, %v673
  %v678 = vadd.f32 %v641, %v673
  %v679 = vadd.f32 %v642, %v673
  %v680 = vadd.f32 %v643, %v673
  %v681 = vadd.f32 %v644, %v673
  %v682 = vadd.f32 %v645, %v673
  %v683 = vadd.f32 %v646, %v673
  %v684 = vadd.f32 %v647, %v673
  %v685 = vadd.f32 %v648, %v673
  %v686 = vadd.f32 %v649, %v673
  %v687 = vadd.f32 %v650, %v673
  %v688 = vadd.f32 %v651, %v673
  %v689 = vadd.f32 %v652, %v673
  %v690 = vadd.f32 %v653, %v673
  %v691 = vadd.f32 %v654, %v673
  %v692 = vadd.f32 %v655, %v673
  %v693 = vadd.f32 %v656, %v673
  %v694 = vadd.f32 %v657, %v673
  %v695 = vadd.f32 %v658, %v673
  %v696 = vadd.f32 %v659, %v673
  %v697 = vadd.f32 %v660, %v673
  %v698 = vadd.f32 %v661, %v673
  %v699 = vadd.f32 %v662, %v673
  %v700 = vadd.f32 %v663, %v673
  %v701 = vadd.f32 %v664, %v673
  %v702 = vadd.f32 %v665, %v673
  %v703 = vadd.f32 %v666, %v673
  %v704 = vadd.f32 %v667, %v673
  %v705 = vmax.f32 %v675, 0.0
  %v706 = vmax.f32 %v676, 0.0
  %v707 = vmax.f32 %v677, 0.0
  %v708 = vmax.f32 %v678, 0.0
  %v709 = vmax.f32 %v679, 0.0
  %v710 = vmax.f32 %v680, 0.0
  %v711 = vmax.f32 %v681, 0.0
  %v712 = vmax.f32 %v682, 0.0
  %v713 = vmax.f32 %v683, 0.0
  %v714 = vmax.f32 %v684, 0.0
  %v715 = vmax.f32 %v685, 0.0
  %v716 = vmax.f32 %v686, 0.0
  %v717 = vmax.f32 %v687, 0.0
  %v718 = vmax.f32 %v688, 0.0
  %v719 = vmax.f32 %v689, 0.0
  %v720 = vmax.f32 %v690, 0.0
  %v721 = vmax.f32 %v691, 0.0
  %v722 = vmax.f32 %v692, 0.0
  %v723 = vmax.f32 %v693, 0.0
  %v724 = vmax.f32 %v694, 0.0
  %v725 = vmax.f32 %v695, 0.0
  %v726 = vmax.f32 %v696, 0.0
  %v727 = vmax.f32 %v697, 0.0
  %v728 = vmax.f32 %v698, 0.0
  %v729 = vmax.f32 %v699, 0.0
  %v730 = vmax.f32 %v700, 0.0
  %v731 = vmax.f32 %v701, 0.0
  %v732 = vmax.f32 %v702, 0.0
  %v733 = vmax.f32 %v703, 0.0
  %v734 = vmax.f32 %v704, 0.0
  %vm735 = vcmask 261120
  %736 = vst.msk [vmem:[%s4] sm:$0xff] %vm735, %v705
  %737 = vst.msk [vmem:[%s4 + $0x8] sm:$0xff] %vm735, %v706
  %738 = vst.msk [vmem:[%s4 + $0x10] sm:$0xff] %vm735, %v707
  %739 = vst.msk [vmem:[%s4 + $0x18] sm:$0xff] %vm735, %v708
  %740 = vst.msk [vmem:[%s4 + $0x20] sm:$0xff] %vm735, %v709
  %741 = vst.msk [vmem:[%s4 + $0x28] sm:$0xff] %vm735, %v710
  %742 = vst.msk [vmem:[%s4 + $0x30] sm:$0xff] %vm735, %v711
  %743 = vst.msk [vmem:[%s4 + $0x38] sm:$0xff] %vm735, %v712
  %744 = vst.msk [vmem:[%s4 + $0x40] sm:$0xff] %vm735, %v713
  %745 = vst.msk [vmem:[%s4 + $0x48] sm:$0xff] %vm735, %v714
  %746 = vst.msk [vmem:[%s4 + $0x50] sm:$0xff] %vm735, %v715
  %747 = vst.msk [vmem:[%s4 + $0x58] sm:$0xff] %vm735, %v716
  %748 = vst.msk [vmem:[%s4 + $0x60] sm:$0xff] %vm735, %v717
  %749 = vst.msk [vmem:[%s4 + $0x68] sm:$0xff] %vm735, %v718
  %750 = vst.msk [vmem:[%s4 + $0x70] sm:$0xff] %vm735, %v719
  %751 = vst.msk [vmem:[%s4 + $0x78] sm:$0xff] %vm735, %v720
  %752 = vst.msk [vmem:[%s4 + $0x80] sm:$0xff] %vm735, %v721
  %753 = vst.msk [vmem:[%s4 + $0x88] sm:$0xff] %vm735, %v722
  %754 = vst.msk [vmem:[%s4 + $0x90] sm:$0xff] %vm735, %v723
  %755 = vst.msk [vmem:[%s4 + $0x98] sm:$0xff] %vm735, %v724
  %756 = vst.msk [vmem:[%s4 + $0xa0] sm:$0xff] %vm735, %v725
  %757 = vst.msk [vmem:[%s4 + $0xa8] sm:$0xff] %vm735, %v726
  %758 = vst.msk [vmem:[%s4 + $0xb0] sm:$0xff] %vm735, %v727
  %759 = vst.msk [vmem:[%s4 + $0xb8] sm:$0xff] %vm735, %v728
  %760 = vst.msk [vmem:[%s4 + $0xc0] sm:$0xff] %vm735, %v729
  %761 = vst.msk [vmem:[%s4 + $0xc8] sm:$0xff] %vm735, %v730
  %762 = vst.msk [vmem:[%s4 + $0xd0] sm:$0xff] %vm735, %v731
  %763 = vst.msk [vmem:[%s4 + $0xd8] sm:$0xff] %vm735, %v732
  %764 = vst.msk [vmem:[%s4 + $0xe0] sm:$0xff] %vm735, %v733
  %765 = vst.msk [vmem:[%s4 + $0xe8] sm:$0xff] %vm735, %v734
  // Predicated region
  $region18: #{dqn_forward.5} parent=0 // pred_check
    _
  $region19: #{dqn_forward.5} parent=0 // pred_check_branch
    %767 = sbr.rel (0) target = $region21
  $region20: #{dqn_forward.5} parent=0 // pred_region
    _
  $region21: #{dqn_forward.5} parent=0 // pred_fallthru
    _
  // Predicated region
  $region22: #{dqn_forward.5} parent=0 // pred_check
    _
  $region23: #{dqn_forward.5} parent=0 // pred_check_branch
    %769 = sbr.rel (0) target = $region25
  $region24: #{dqn_forward.5} parent=0 // pred_region
    _
  $region25: #{dqn_forward.5} parent=0 // pred_fallthru
    _

// kernel: dqn_forward.6
$region0: #{dqn_forward.6}
  #allocation0 [shape = 'u32[]', space=smem, size = 0x4, offset = 0x4, fixed_abs, tag = 'smem constant byte address 0x4 - core index']
  #allocation1 [shape = 'u32[144,128]{1,0:T(1,128)}', space=vmem, size = 0x12000, scoped, tag = 'internal scratch']
  %s0 = inlined_call_operand.vmem [shape: f32[32,896], index: 0, kind: input, shape index: {}]
  %s1 = inlined_call_operand.vmem [shape: f32[896,32], index: 1, kind: input, shape index: {}]
  %s2 = inlined_call_operand.vmem [shape: f32[1,32], index: 2, kind: input, shape index: {}]
  %s3 = inlined_call_operand.vmem [shape: f32[1,32], index: 3, kind: input, shape index: {}]
  %s4 = inlined_call_operand.vmem [shape: f32[32,32], index: 4, kind: output, shape index: {}]
  %s5 = sld [smem:[#allocation0]]
  $region26: #{dqn_forward.6} parent=0
    _
  %s7 = ssub.s32 1, %s5
  %s8 = scalar_select 0, %s7, %s5
  // Predicated region
  $region2: #{dqn_forward.6} parent=0 // pred_check
    _
  $region3: #{dqn_forward.6} parent=0 // pred_check_branch
    %10 = sbr.rel (0) target = $region5
  $region4: #{dqn_forward.6} parent=0 // pred_region
    _
  $region5: #{dqn_forward.6} parent=0 // pred_fallthru
    _
  // Predicated region
  $region6: #{dqn_forward.6} parent=0 // pred_check
    _
  $region7: #{dqn_forward.6} parent=0 // pred_check_branch
    %12 = sbr.rel (0) target = $region9
  $region8: #{dqn_forward.6} parent=0 // pred_region
    _
  $region9: #{dqn_forward.6} parent=0 // pred_fallthru
    _
  // Predicated region
  $region10: #{dqn_forward.6} parent=0 // pred_check
    _
  $region11: #{dqn_forward.6} parent=0 // pred_check_branch
    %14 = sbr.rel (0) target = $region13
  $region12: #{dqn_forward.6} parent=0 // pred_region
    _
  $region13: #{dqn_forward.6} parent=0 // pred_fallthru
    _
  // Predicated region
  $region14: #{dqn_forward.6} parent=0 // pred_check
    _
  $region15: #{dqn_forward.6} parent=0 // pred_check_branch
    %16 = sbr.rel (0) target = $region17
  $region16: #{dqn_forward.6} parent=0 // pred_region
    _
  $region17: #{dqn_forward.6} parent=0 // pred_fallthru
    _
  %v17 = vld [vmem:[%s0] sm:$0xff]
  %v18 = vld [vmem:[%s0 + $0x8] sm:$0xff]
  %v19 = vld [vmem:[%s0 + $0x10] sm:$0xff]
  %v20 = vld [vmem:[%s0 + $0x18] sm:$0xff]
  %v21 = vld [vmem:[%s0 + $0x20] sm:$0xff]
  %v22 = vld [vmem:[%s0 + $0x28] sm:$0xff]
  %v23 = vld [vmem:[%s0 + $0x30] sm:$0xff]
  %v24 = vld [vmem:[%s0 + $0x38] sm:$0xff]
  %v25 = vld [vmem:[%s0 + $0x40] sm:$0xff]
  %v26 = vld [vmem:[%s0 + $0x48] sm:$0xff]
  %v27 = vld [vmem:[%s0 + $0x50] sm:$0xff]
  %v28 = vld [vmem:[%s0 + $0x58] sm:$0xff]
  %v29 = vld [vmem:[%s0 + $0x60] sm:$0xff]
  %v30 = vld [vmem:[%s0 + $0x68] sm:$0xff]
  %v31 = vld [vmem:[%s0 + $0x70] sm:$0xff]
  %v32 = vld [vmem:[%s0 + $0x78] sm:$0xff]
  %v33 = vld [vmem:[%s0 + $0x80] sm:$0xff]
  %v34 = vld [vmem:[%s0 + $0x88] sm:$0xff]
  %v35 = vld [vmem:[%s0 + $0x90] sm:$0xff]
  %v36 = vld [vmem:[%s0 + $0x98] sm:$0xff]
  %v37 = vld [vmem:[%s0 + $0xa0] sm:$0xff]
  %v38 = vld [vmem:[%s0 + $0xa8] sm:$0xff]
  %v39 = vld [vmem:[%s0 + $0xb0] sm:$0xff]
  %v40 = vld [vmem:[%s0 + $0xb8] sm:$0xff]
  %v41 = vld [vmem:[%s0 + $0xc0] sm:$0xff]
  %v42 = vld [vmem:[%s0 + $0xc8] sm:$0xff]
  %v43 = vld [vmem:[%s0 + $0xd0] sm:$0xff]
  %v44 = vld [vmem:[%s0 + $0xd8] sm:$0xff]
  %v45 = vld [vmem:[%s1] sm:$0xff]
  %v46 = vld [vmem:[%s1 + $0x8] sm:$0xff]
  %v47 = vld [vmem:[%s1 + $0x10] sm:$0xff]
  %v48 = vld [vmem:[%s1 + $0x18] sm:$0xff]
  %v49 = vld [vmem:[%s1 + $0x20] sm:$0xff]
  %v50 = vld [vmem:[%s1 + $0x28] sm:$0xff]
  %v51 = vld [vmem:[%s1 + $0x30] sm:$0xff]
  %v52 = vld [vmem:[%s1 + $0x38] sm:$0xff]
  %v53 = vld [vmem:[%s1 + $0x40] sm:$0xff]
  %v54 = vld [vmem:[%s1 + $0x48] sm:$0xff]
  %v55 = vld [vmem:[%s1 + $0x50] sm:$0xff]
  %v56 = vld [vmem:[%s1 + $0x58] sm:$0xff]
  %v57 = vld [vmem:[%s1 + $0x60] sm:$0xff]
  %v58 = vld [vmem:[%s1 + $0x68] sm:$0xff]
  %v59 = vld [vmem:[%s1 + $0x70] sm:$0xff]
  %v60 = vld [vmem:[%s1 + $0x78] sm:$0xff]
  %v61 = vld [vmem:[%s1 + $0x80] sm:$0xff]
  %v62 = vld [vmem:[%s1 + $0x88] sm:$0xff]
  %v63 = vld [vmem:[%s1 + $0x90] sm:$0xff]
  %v64 = vld [vmem:[%s1 + $0x98] sm:$0xff]
  %v65 = vld [vmem:[%s1 + $0xa0] sm:$0xff]
  %v66 = vld [vmem:[%s1 + $0xa8] sm:$0xff]
  %v67 = vld [vmem:[%s1 + $0xb0] sm:$0xff]
  %v68 = vld [vmem:[%s1 + $0xb8] sm:$0xff]
  %v69 = vld [vmem:[%s1 + $0xc0] sm:$0xff]
  %v70 = vld [vmem:[%s1 + $0xc8] sm:$0xff]
  %v71 = vld [vmem:[%s1 + $0xd0] sm:$0xff]
  %v72 = vld [vmem:[%s1 + $0xd8] sm:$0xff]
  %v73 = vld [vmem:[%s1 + $0xe0] sm:$0xff]
  %v74 = vld [vmem:[%s1 + $0xe8] sm:$0xff]
  %v75 = vld [vmem:[%s1 + $0xf0] sm:$0xff]
  %v76 = vld [vmem:[%s1 + $0xf8] sm:$0xff]
  %v77 = vld [vmem:[%s1 + $0x100] sm:$0xff]
  %v78 = vld [vmem:[%s1 + $0x108] sm:$0xff]
  %v79 = vld [vmem:[%s1 + $0x110] sm:$0xff]
  %v80 = vld [vmem:[%s1 + $0x118] sm:$0xff]
  %v81 = vld [vmem:[%s1 + $0x120] sm:$0xff]
  %v82 = vld [vmem:[%s1 + $0x128] sm:$0xff]
  %v83 = vld [vmem:[%s1 + $0x130] sm:$0xff]
  %v84 = vld [vmem:[%s1 + $0x138] sm:$0xff]
  %v85 = vld [vmem:[%s1 + $0x140] sm:$0xff]
  %v86 = vld [vmem:[%s1 + $0x148] sm:$0xff]
  %v87 = vld [vmem:[%s1 + $0x150] sm:$0xff]
  %v88 = vld [vmem:[%s1 + $0x158] sm:$0xff]
  %v89 = vld [vmem:[%s1 + $0x160] sm:$0xff]
  %v90 = vld [vmem:[%s1 + $0x168] sm:$0xff]
  %v91 = vld [vmem:[%s1 + $0x170] sm:$0xff]
  %v92 = vld [vmem:[%s1 + $0x178] sm:$0xff]
  %v93 = vld [vmem:[%s1 + $0x180] sm:$0xff]
  %v94 = vld [vmem:[%s1 + $0x188] sm:$0xff]
  %v95 = vld [vmem:[%s1 + $0x190] sm:$0xff]
  %v96 = vld [vmem:[%s1 + $0x198] sm:$0xff]
  %v97 = vld [vmem:[%s1 + $0x1a0] sm:$0xff]
  %v98 = vld [vmem:[%s1 + $0x1a8] sm:$0xff]
  %v99 = vld [vmem:[%s1 + $0x1b0] sm:$0xff]
  %v100 = vld [vmem:[%s1 + $0x1b8] sm:$0xff]
  %v101 = vld [vmem:[%s1 + $0x1c0] sm:$0xff]
  %v102 = vld [vmem:[%s1 + $0x1c8] sm:$0xff]
  %v103 = vld [vmem:[%s1 + $0x1d0] sm:$0xff]
  %v104 = vld [vmem:[%s1 + $0x1d8] sm:$0xff]
  %v105 = vld [vmem:[%s1 + $0x1e0] sm:$0xff]
  %v106 = vld [vmem:[%s1 + $0x1e8] sm:$0xff]
  %v107 = vld [vmem:[%s1 + $0x1f0] sm:$0xff]
  %v108 = vld [vmem:[%s1 + $0x1f8] sm:$0xff]
  %v109 = vld [vmem:[%s1 + $0x200] sm:$0xff]
  %v110 = vld [vmem:[%s1 + $0x208] sm:$0xff]
  %v111 = vld [vmem:[%s1 + $0x210] sm:$0xff]
  %v112 = vld [vmem:[%s1 + $0x218] sm:$0xff]
  %v113 = vld [vmem:[%s1 + $0x220] sm:$0xff]
  %v114 = vld [vmem:[%s1 + $0x228] sm:$0xff]
  %v115 = vld [vmem:[%s1 + $0x230] sm:$0xff]
  %v116 = vld [vmem:[%s1 + $0x238] sm:$0xff]
  %v117 = vld [vmem:[%s1 + $0x240] sm:$0xff]
  %v118 = vld [vmem:[%s1 + $0x248] sm:$0xff]
  %v119 = vld [vmem:[%s1 + $0x250] sm:$0xff]
  %v120 = vld [vmem:[%s1 + $0x258] sm:$0xff]
  %v121 = vld [vmem:[%s1 + $0x260] sm:$0xff]
  %v122 = vld [vmem:[%s1 + $0x268] sm:$0xff]
  %v123 = vld [vmem:[%s1 + $0x270] sm:$0xff]
  %v124 = vld [vmem:[%s1 + $0x278] sm:$0xff]
  %v125 = vld [vmem:[%s1 + $0x280] sm:$0xff]
  %v126 = vld [vmem:[%s1 + $0x288] sm:$0xff]
  %v127 = vld [vmem:[%s1 + $0x290] sm:$0xff]
  %v128 = vld [vmem:[%s1 + $0x298] sm:$0xff]
  %v129 = vld [vmem:[%s1 + $0x2a0] sm:$0xff]
  %v130 = vld [vmem:[%s1 + $0x2a8] sm:$0xff]
  %v131 = vld [vmem:[%s1 + $0x2b0] sm:$0xff]
  %v132 = vld [vmem:[%s1 + $0x2b8] sm:$0xff]
  %v133 = vld [vmem:[%s1 + $0x2c0] sm:$0xff]
  %v134 = vld [vmem:[%s1 + $0x2c8] sm:$0xff]
  %v135 = vld [vmem:[%s1 + $0x2d0] sm:$0xff]
  %v136 = vld [vmem:[%s1 + $0x2d8] sm:$0xff]
  %v137 = vld [vmem:[%s1 + $0x2e0] sm:$0xff]
  %v138 = vld [vmem:[%s1 + $0x2e8] sm:$0xff]
  %v139 = vld [vmem:[%s1 + $0x2f0] sm:$0xff]
  %v140 = vld [vmem:[%s1 + $0x2f8] sm:$0xff]
  %v141 = vld [vmem:[%s1 + $0x300] sm:$0xff]
  %v142 = vld [vmem:[%s1 + $0x308] sm:$0xff]
  %v143 = vld [vmem:[%s1 + $0x310] sm:$0xff]
  %v144 = vld [vmem:[%s1 + $0x318] sm:$0xff]
  %v145 = vld [vmem:[%s1 + $0x320] sm:$0xff]
  %v146 = vld [vmem:[%s1 + $0x328] sm:$0xff]
  %v147 = vld [vmem:[%s1 + $0x330] sm:$0xff]
  %v148 = vld [vmem:[%s1 + $0x338] sm:$0xff]
  %v149 = vld [vmem:[%s1 + $0x340] sm:$0xff]
  %v150 = vld [vmem:[%s1 + $0x348] sm:$0xff]
  %v151 = vld [vmem:[%s1 + $0x350] sm:$0xff]
  %v152 = vld [vmem:[%s1 + $0x358] sm:$0xff]
  %v153 = vld [vmem:[%s1 + $0x360] sm:$0xff]
  %v154 = vld [vmem:[%s1 + $0x368] sm:$0xff]
  %v155 = vld [vmem:[%s1 + $0x370] sm:$0xff]
  %v156 = vld [vmem:[%s1 + $0x378] sm:$0xff]
  %157 = vmatprep.subr.mxu0 0.0
  %158 = vmatpush1.msra.mxu0 %v45
  %159 = vmatprep.subr.mxu0 0.0
  %160 = vmatpush1.msra.mxu0 %v46
  %161 = vmatprep.subr.mxu0 0.0
  %162 = vmatpush1.msra.mxu0 %v47
  %163 = vmatprep.subr.mxu0 0.0
  %164 = vmatpush1.msra.mxu0 %v48
  %165 = vmatprep.subr.mxu0 0.0
  %166 = vmatpush1.msra.mxu0 %v49
  %167 = vmatprep.subr.mxu0 0.0
  %168 = vmatpush1.msra.mxu0 %v50
  %169 = vmatprep.subr.mxu0 0.0
  %170 = vmatpush1.msra.mxu0 %v51
  %171 = vmatprep.subr.mxu0 0.0
  %172 = vmatpush1.msra.mxu0 %v52
  %173 = vmatprep.subr.mxu0 0.0
  %174 = vmatpush1.msra.mxu0 %v53
  %175 = vmatprep.subr.mxu0 0.0
  %176 = vmatpush1.msra.mxu0 %v54
  %177 = vmatprep.subr.mxu0 0.0
  %178 = vmatpush1.msra.mxu0 %v55
  %179 = vmatprep.subr.mxu0 0.0
  %180 = vmatpush1.msra.mxu0 %v56
  %181 = vmatprep.subr.mxu0 0.0
  %182 = vmatpush1.msra.mxu0 %v57
  %183 = vmatprep.subr.mxu0 0.0
  %184 = vmatpush1.msra.mxu0 %v58
  %185 = vmatprep.subr.mxu0 0.0
  %186 = vmatpush1.msra.mxu0 %v59
  %187 = vmatprep.subr.mxu0 0.0
  %188 = vmatpush1.msra.mxu0 %v60
  %189 = vmatprep.subr.mxu0 0.0
  %190 = vmatpush1.msra.mxu0 %v61
  %191 = vmatprep.subr.mxu0 0.0
  %192 = vmatpush1.msra.mxu0 %v62
  %193 = vmatprep.subr.mxu0 0.0
  %194 = vmatpush1.msra.mxu0 %v63
  %195 = vmatprep.subr.mxu0 0.0
  %196 = vmatpush1.msra.mxu0 %v64
  %197 = vmatprep.subr.mxu0 0.0
  %198 = vmatpush1.msra.mxu0 %v65
  %199 = vmatprep.subr.mxu0 0.0
  %200 = vmatpush1.msra.mxu0 %v66
  %201 = vmatprep.subr.mxu0 0.0
  %202 = vmatpush1.msra.mxu0 %v67
  %203 = vmatprep.subr.mxu0 0.0
  %204 = vmatpush1.msra.mxu0 %v68
  %205 = vmatprep.subr.mxu0 0.0
  %206 = vmatpush1.msra.mxu0 %v69
  %207 = vmatprep.subr.mxu0 0.0
  %208 = vmatpush1.msra.mxu0 %v70
  %209 = vmatprep.subr.mxu0 0.0
  %210 = vmatpush1.msra.mxu0 %v71
  %211 = vmatprep.subr.mxu0 0.0
  %212 = vmatpush1.msra.mxu0 %v72
  %213 = vmatprep.subr.mxu0 0.0
  %214 = vmatpush1.msra.mxu0 %v73
  %215 = vmatprep.subr.mxu0 0.0
  %216 = vmatpush1.msra.mxu0 %v74
  %217 = vmatprep.subr.mxu0 0.0
  %218 = vmatpush1.msra.mxu0 %v75
  %219 = vmatprep.subr.mxu0 0.0
  %220 = vmatpush1.msra.mxu0 %v76
  %221 = vmatprep.mubr.f32.mxu0 %v18
  %222 = vmatmul.mubr.f32.gmra.mrb[0].mxu0 %v17
  %v223 = vpop.f32.mrb[0].mxu0
  %v224 = vadd.f32 0.0, %v223
  %v225 = vpop.f32.mrb[0].mxu0
  %226 = vmatprep.mubr.f32.mxu0 %v25
  %227 = vmatmul.mubr.f32.gmra.mrb[0].mxu0 %v24
  %v228 = vpop.f32.mrb[0].mxu0
  %v229 = vadd.f32 0.0, %v228
  %v230 = vpop.f32.mrb[0].mxu0
  %231 = vmatprep.mubr.f32.mxu0 %v32
  %232 = vmatmul.mubr.f32.gmra.mrb[0].mxu0 %v31
  %v233 = vpop.f32.mrb[0].mxu0
  %v234 = vadd.f32 0.0, %v233
  %v235 = vpop.f32.mrb[0].mxu0
  %236 = vmatprep.mubr.f32.mxu0 %v39
  %237 = vmatmul.mubr.f32.gmra.mrb[0].mxu0 %v38
  %v238 = vpop.f32.mrb[0].mxu0
  %v239 = vadd.f32 0.0, %v238
  %v240 = vpop.f32.mrb[0].mxu0
  %241 = vdwg.mxu0
  %242 = vmatprep.subr.mxu0 0.0
  %243 = vmatpush1.msra.mxu0 %v77
  %244 = vmatprep.subr.mxu0 0.0
  %245 = vmatpush1.msra.mxu0 %v78
  %246 = vmatprep.subr.mxu0 0.0
  %247 = vmatpush1.msra.mxu0 %v79
  %248 = vmatprep.subr.mxu0 0.0
  %249 = vmatpush1.msra.mxu0 %v80
  %250 = vmatprep.subr.mxu0 0.0
  %251 = vmatpush1.msra.mxu0 %v81
  %252 = vmatprep.subr.mxu0 0.0
  %253 = vmatpush1.msra.mxu0 %v82
  %254 = vmatprep.subr.mxu0 0.0
  %255 = vmatpush1.msra.mxu0 %v83
  %256 = vmatprep.subr.mxu0 0.0
  %257 = vmatpush1.msra.mxu0 %v84
  %258 = vmatprep.subr.mxu0 0.0
  %259 = vmatpush1.msra.mxu0 %v85
  %260 = vmatprep.subr.mxu0 0.0
  %261 = vmatpush1.msra.mxu0 %v86
  %262 = vmatprep.subr.mxu0 0.0
  %263 = vmatpush1.msra.mxu0 %v87
  %264 = vmatprep.subr.mxu0 0.0
  %265 = vmatpush1.msra.mxu0 %v88
  %266 = vmatprep.subr.mxu0 0.0
  %267 = vmatpush1.msra.mxu0 %v89
  %268 = vmatprep.subr.mxu0 0.0
  %269 = vmatpush1.msra.mxu0 %v90
  %270 = vmatprep.subr.mxu0 0.0
  %271 = vmatpush1.msra.mxu0 %v91
  %272 = vmatprep.subr.mxu0 0.0
  %273 = vmatpush1.msra.mxu0 %v92
  %274 = vmatprep.subr.mxu0 0.0
  %275 = vmatpush1.msra.mxu0 %v93
  %276 = vmatprep.subr.mxu0 0.0
  %277 = vmatpush1.msra.mxu0 %v94
  %278 = vmatprep.subr.mxu0 0.0
  %279 = vmatpush1.msra.mxu0 %v95
  %280 = vmatprep.subr.mxu0 0.0
  %281 = vmatpush1.msra.mxu0 %v96
  %282 = vmatprep.subr.mxu0 0.0
  %283 = vmatpush1.msra.mxu0 %v97
  %284 = vmatprep.subr.mxu0 0.0
  %285 = vmatpush1.msra.mxu0 %v98
  %286 = vmatprep.subr.mxu0 0.0
  %287 = vmatpush1.msra.mxu0 %v99
  %288 = vmatprep.subr.mxu0 0.0
  %289 = vmatpush1.msra.mxu0 %v100
  %290 = vmatprep.subr.mxu0 0.0
  %291 = vmatpush1.msra.mxu0 %v101
  %292 = vmatprep.subr.mxu0 0.0
  %293 = vmatpush1.msra.mxu0 %v102
  %294 = vmatprep.subr.mxu0 0.0
  %295 = vmatpush1.msra.mxu0 %v103
  %296 = vmatprep.subr.mxu0 0.0
  %297 = vmatpush1.msra.mxu0 %v104
  %298 = vmatprep.subr.mxu0 0.0
  %299 = vmatpush1.msra.mxu0 %v105
  %300 = vmatprep.subr.mxu0 0.0
  %301 = vmatpush1.msra.mxu0 %v106
  %302 = vmatprep.subr.mxu0 0.0
  %303 = vmatpush1.msra.mxu0 %v107
  %304 = vmatprep.subr.mxu0 0.0
  %305 = vmatpush1.msra.mxu0 %v108
  %306 = vmatprep.mubr.f32.mxu0 %v20
  %307 = vmatmul.mubr.f32.gmra.mrb[0].mxu0 %v19
  %v308 = vpop.f32.mrb[0].mxu0
  %v309 = vadd.f32 %v224, %v308
  %v310 = vpop.f32.mrb[0].mxu0
  %311 = vmatprep.mubr.f32.mxu0 %v27
  %312 = vmatmul.mubr.f32.gmra.mrb[0].mxu0 %v26
  %v313 = vpop.f32.mrb[0].mxu0
  %v314 = vadd.f32 %v229, %v313
  %v315 = vpop.f32.mrb[0].mxu0
  %316 = vmatprep.mubr.f32.mxu0 %v34
  %317 = vmatmul.mubr.f32.gmra.mrb[0].mxu0 %v33
  %v318 = vpop.f32.mrb[0].mxu0
  %v319 = vadd.f32 %v234, %v318
  %v320 = vpop.f32.mrb[0].mxu0
  %321 = vmatprep.mubr.f32.mxu0 %v41
  %322 = vmatmul.mubr.f32.gmra.mrb[0].mxu0 %v40
  %v323 = vpop.f32.mrb[0].mxu0
  %v324 = vadd.f32 %v239, %v323
  %v325 = vpop.f32.mrb[0].mxu0
  %326 = vdwg.mxu0
  %327 = vmatprep.subr.mxu0 0.0
  %328 = vmatpush1.msra.mxu0 %v109
  %329 = vmatprep.subr.mxu0 0.0
  %330 = vmatpush1.msra.mxu0 %v110
  %331 = vmatprep.subr.mxu0 0.0
  %332 = vmatpush1.msra.mxu0 %v111
  %333 = vmatprep.subr.mxu0 0.0
  %334 = vmatpush1.msra.mxu0 %v112
  %335 = vmatprep.subr.mxu0 0.0
  %336 = vmatpush1.msra.mxu0 %v113
  %337 = vmatprep.subr.mxu0 0.0
  %338 = vmatpush1.msra.mxu0 %v114
  %339 = vmatprep.subr.mxu0 0.0
  %340 = vmatpush1.msra.mxu0 %v115
  %341 = vmatprep.subr.mxu0 0.0
  %342 = vmatpush1.msra.mxu0 %v116
  %343 = vmatprep.subr.mxu0 0.0
  %344 = vmatpush1.msra.mxu0 %v117
  %345 = vmatprep.subr.mxu0 0.0
  %346 = vmatpush1.msra.mxu0 %v118
  %347 = vmatprep.subr.mxu0 0.0
  %348 = vmatpush1.msra.mxu0 %v119
  %349 = vmatprep.subr.mxu0 0.0
  %350 = vmatpush1.msra.mxu0 %v120
  %351 = vmatprep.subr.mxu0 0.0
  %352 = vmatpush1.msra.mxu0 %v121
  %353 = vmatprep.subr.mxu0 0.0
  %354 = vmatpush1.msra.mxu0 %v122
  %355 = vmatprep.subr.mxu0 0.0
  %356 = vmatpush1.msra.mxu0 %v123
  %357 = vmatprep.subr.mxu0 0.0
  %358 = vmatpush1.msra.mxu0 %v124
  %359 = vmatprep.subr.mxu0 0.0
  %360 = vmatpush1.msra.mxu0 %v125
  %361 = vmatprep.subr.mxu0 0.0
  %362 = vmatpush1.msra.mxu0 %v126
  %363 = vmatprep.subr.mxu0 0.0
  %364 = vmatpush1.msra.mxu0 %v127
  %365 = vmatprep.subr.mxu0 0.0
  %366 = vmatpush1.msra.mxu0 %v128
  %367 = vmatprep.subr.mxu0 0.0
  %368 = vmatpush1.msra.mxu0 %v129
  %369 = vmatprep.subr.mxu0 0.0
  %370 = vmatpush1.msra.mxu0 %v130
  %371 = vmatprep.subr.mxu0 0.0
  %372 = vmatpush1.msra.mxu0 %v131
  %373 = vmatprep.subr.mxu0 0.0
  %374 = vmatpush1.msra.mxu0 %v132
  %375 = vmatprep.subr.mxu0 0.0
  %376 = vmatpush1.msra.mxu0 %v133
  %377 = vmatprep.subr.mxu0 0.0
  %378 = vmatpush1.msra.mxu0 %v134
  %379 = vmatprep.subr.mxu0 0.0
  %380 = vmatpush1.msra.mxu0 %v135
  %381 = vmatprep.subr.mxu0 0.0
  %382 = vmatpush1.msra.mxu0 %v136
  %383 = vmatprep.subr.mxu0 0.0
  %384 = vmatpush1.msra.mxu0 %v137
  %385 = vmatprep.subr.mxu0 0.0
  %386 = vmatpush1.msra.mxu0 %v138
  %387 = vmatprep.subr.mxu0 0.0
  %388 = vmatpush1.msra.mxu0 %v139
  %389 = vmatprep.subr.mxu0 0.0
  %390 = vmatpush1.msra.mxu0 %v140
  %391 = vmatprep.mubr.f32.mxu0 %v22
  %392 = vmatmul.mubr.f32.gmra.mrb[0].mxu0 %v21
  %v393 = vpop.f32.mrb[0].mxu0
  %v394 = vadd.f32 %v309, %v393
  %v395 = vpop.f32.mrb[0].mxu0
  %396 = vmatprep.mubr.f32.mxu0 %v29
  %397 = vmatmul.mubr.f32.gmra.mrb[0].mxu0 %v28
  %v398 = vpop.f32.mrb[0].mxu0
  %v399 = vadd.f32 %v314, %v398
  %v400 = vpop.f32.mrb[0].mxu0
  %401 = vmatprep.mubr.f32.mxu0 %v36
  %402 = vmatmul.mubr.f32.gmra.mrb[0].mxu0 %v35
  %v403 = vpop.f32.mrb[0].mxu0
  %v404 = vadd.f32 %v319, %v403
  %v405 = vpop.f32.mrb[0].mxu0
  %406 = vmatprep.mubr.f32.mxu0 %v43
  %407 = vmatmul.mubr.f32.gmra.mrb[0].mxu0 %v42
  %v408 = vpop.f32.mrb[0].mxu0
  %v409 = vadd.f32 %v324, %v408
  %v410 = vpop.f32.mrb[0].mxu0
  %411 = vdwg.mxu0
  %412 = vmatprep.subr.mxu0 0.0
  %413 = vmatpush1.msra.mxu0 %v141
  %414 = vmatprep.subr.mxu0 0.0
  %415 = vmatpush1.msra.mxu0 %v142
  %416 = vmatprep.subr.mxu0 0.0
  %417 = vmatpush1.msra.mxu0 %v143
  %418 = vmatprep.subr.mxu0 0.0
  %419 = vmatpush1.msra.mxu0 %v144
  %420 = vmatprep.subr.mxu0 0.0
  %421 = vmatpush1.msra.mxu0 %v145
  %422 = vmatprep.subr.mxu0 0.0
  %423 = vmatpush1.msra.mxu0 %v146
  %424 = vmatprep.subr.mxu0 0.0
  %425 = vmatpush1.msra.mxu0 %v147
  %426 = vmatprep.subr.mxu0 0.0
  %427 = vmatpush1.msra.mxu0 %v148
  %428 = vmatprep.subr.mxu0 0.0
  %429 = vmatpush1.msra.mxu0 %v149
  %430 = vmatprep.subr.mxu0 0.0
  %431 = vmatpush1.msra.mxu0 %v150
  %432 = vmatprep.subr.mxu0 0.0
  %433 = vmatpush1.msra.mxu0 %v151
  %434 = vmatprep.subr.mxu0 0.0
  %435 = vmatpush1.msra.mxu0 %v152
  %436 = vmatprep.subr.mxu0 0.0
  %437 = vmatpush1.msra.mxu0 %v153
  %438 = vmatprep.subr.mxu0 0.0
  %439 = vmatpush1.msra.mxu0 %v154
  %440 = vmatprep.subr.mxu0 0.0
  %441 = vmatpush1.msra.mxu0 %v155
  %442 = vmatprep.subr.mxu0 0.0
  %443 = vmatpush1.msra.mxu0 %v156
  %444 = vmatprep.subr.mxu0 0.0
  %445 = vmatpush1.msra.mxu0 0.0
  %446 = vmatprep.subr.mxu0 0.0
  %447 = vmatpush1.msra.mxu0 0.0
  %448 = vmatprep.subr.mxu0 0.0
  %449 = vmatpush1.msra.mxu0 0.0
  %450 = vmatprep.subr.mxu0 0.0
  %451 = vmatpush1.msra.mxu0 0.0
  %452 = vmatprep.subr.mxu0 0.0
  %453 = vmatpush1.msra.mxu0 0.0
  %454 = vmatprep.subr.mxu0 0.0
  %455 = vmatpush1.msra.mxu0 0.0
  %456 = vmatprep.subr.mxu0 0.0
  %457 = vmatpush1.msra.mxu0 0.0
  %458 = vmatprep.subr.mxu0 0.0
  %459 = vmatpush1.msra.mxu0 0.0
  %460 = vmatprep.subr.mxu0 0.0
  %461 = vmatpush1.msra.mxu0 0.0
  %462 = vmatprep.subr.mxu0 0.0
  %463 = vmatpush1.msra.mxu0 0.0
  %464 = vmatprep.subr.mxu0 0.0
  %465 = vmatpush1.msra.mxu0 0.0
  %466 = vmatprep.subr.mxu0 0.0
  %467 = vmatpush1.msra.mxu0 0.0
  %468 = vmatprep.subr.mxu0 0.0
  %469 = vmatpush1.msra.mxu0 0.0
  %470 = vmatprep.subr.mxu0 0.0
  %471 = vmatpush1.msra.mxu0 0.0
  %472 = vmatprep.subr.mxu0 0.0
  %473 = vmatpush1.msra.mxu0 0.0
  %474 = vmatprep.subr.mxu0 0.0
  %475 = vmatpush1.msra.mxu0 0.0
  %476 = vmatprep.mubr.f32.mxu0 0.0
  %477 = vmatmul.mubr.f32.gmra.mrb[0].mxu0 %v23
  %v478 = vpop.f32.mrb[0].mxu0
  %v479 = vadd.f32 %v394, %v478
  %v480 = vpop.f32.mrb[0].mxu0
  %481 = vmatprep.mubr.f32.mxu0 0.0
  %482 = vmatmul.mubr.f32.gmra.mrb[0].mxu0 %v30
  %v483 = vpop.f32.mrb[0].mxu0
  %v484 = vadd.f32 %v399, %v483
  %v485 = vpop.f32.mrb[0].mxu0
  %486 = vmatprep.mubr.f32.mxu0 0.0
  %487 = vmatmul.mubr.f32.gmra.mrb[0].mxu0 %v37
  %v488 = vpop.f32.mrb[0].mxu0
  %v489 = vadd.f32 %v404, %v488
  %v490 = vpop.f32.mrb[0].mxu0
  %491 = vmatprep.mubr.f32.mxu0 0.0
  %492 = vmatmul.mubr.f32.gmra.mrb[0].mxu0 %v44
  %v493 = vpop.f32.mrb[0].mxu0
  %v494 = vadd.f32 %v409, %v493
  %v495 = vpop.f32.mrb[0].mxu0
  %496 = vdwg.mxu0
  %v497 = vld [vmem:[%s2] sm:$0x1]
  %v499 = vlaneseq
  %v500 = vshrl.u32 %v499, 7
  %v501 = vsub.s32 0, %v500
  %v502 = vrot.slane %v497, %v501
  %v504 = vmul.f32 %v479, %v502
  %v505 = vmul.f32 %v484, %v502
  %v506 = vmul.f32 %v489, %v502
  %v507 = vmul.f32 %v494, %v502
  %v508 = vld [vmem:[%s3] sm:$0x1]
  %v510 = vlaneseq
  %v511 = vshrl.u32 %v510, 7
  %v512 = vsub.s32 0, %v511
  %v513 = vrot.slane %v508, %v512
  %v515 = vadd.f32 %v504, %v513
  %v516 = vadd.f32 %v505, %v513
  %v517 = vadd.f32 %v506, %v513
  %v518 = vadd.f32 %v507, %v513
  %v519 = vmax.f32 %v515, 0.0
  %v520 = vmax.f32 %v516, 0.0
  %v521 = vmax.f32 %v517, 0.0
  %v522 = vmax.f32 %v518, 0.0
  %vm523 = vcmask 261120
  %524 = vst.msk [vmem:[%s4] sm:$0xff] %vm523, %v519
  %525 = vst.msk [vmem:[%s4 + $0x8] sm:$0xff] %vm523, %v520
  %526 = vst.msk [vmem:[%s4 + $0x10] sm:$0xff] %vm523, %v521
  %527 = vst.msk [vmem:[%s4 + $0x18] sm:$0xff] %vm523, %v522
  // Predicated region
  $region18: #{dqn_forward.6} parent=0 // pred_check
    _
  $region19: #{dqn_forward.6} parent=0 // pred_check_branch
    %529 = sbr.rel (0) target = $region21
  $region20: #{dqn_forward.6} parent=0 // pred_region
    _
  $region21: #{dqn_forward.6} parent=0 // pred_fallthru
    _
  // Predicated region
  $region22: #{dqn_forward.6} parent=0 // pred_check
    _
  $region23: #{dqn_forward.6} parent=0 // pred_check_branch
    %531 = sbr.rel (0) target = $region25
  $region24: #{dqn_forward.6} parent=0 // pred_region
    _
  $region25: #{dqn_forward.6} parent=0 // pred_fallthru
    _

// kernel: dqn_forward.7
$region0: #{dqn_forward.7}
  #allocation0 [shape = 'u32[]', space=smem, size = 0x4, offset = 0x4, fixed_abs, tag = 'smem constant byte address 0x4 - core index']
  #allocation1 [shape = 'u32[144,128]{1,0:T(1,128)}', space=vmem, size = 0x12000, scoped, tag = 'internal scratch']
  %s0 = inlined_call_operand.vmem [shape: f32[8,512], index: 0, kind: input, shape index: {}]
  %s1 = inlined_call_operand.vmem [shape: f32[512,2], index: 1, kind: input, shape index: {}]
  %s2 = inlined_call_operand.vmem [shape: f32[1,2], index: 2, kind: input, shape index: {}]
  %s3 = inlined_call_operand.vmem [shape: f32[1,2], index: 3, kind: input, shape index: {}]
  %s4 = inlined_call_operand.vmem [shape: f32[8,2], index: 4, kind: output, shape index: {}]
  %s5 = sld [smem:[#allocation0]]
  $region26: #{dqn_forward.7} parent=0
    _
  %s7 = ssub.s32 1, %s5
  %s8 = scalar_select 0, %s7, %s5
  // Predicated region
  $region2: #{dqn_forward.7} parent=0 // pred_check
    _
  $region3: #{dqn_forward.7} parent=0 // pred_check_branch
    %10 = sbr.rel (0) target = $region5
  $region4: #{dqn_forward.7} parent=0 // pred_region
    _
  $region5: #{dqn_forward.7} parent=0 // pred_fallthru
    _
  // Predicated region
  $region6: #{dqn_forward.7} parent=0 // pred_check
    _
  $region7: #{dqn_forward.7} parent=0 // pred_check_branch
    %12 = sbr.rel (0) target = $region9
  $region8: #{dqn_forward.7} parent=0 // pred_region
    _
  $region9: #{dqn_forward.7} parent=0 // pred_fallthru
    _
  // Predicated region
  $region10: #{dqn_forward.7} parent=0 // pred_check
    _
  $region11: #{dqn_forward.7} parent=0 // pred_check_branch
    %14 = sbr.rel (0) target = $region13
  $region12: #{dqn_forward.7} parent=0 // pred_region
    _
  $region13: #{dqn_forward.7} parent=0 // pred_fallthru
    _
  // Predicated region
  $region14: #{dqn_forward.7} parent=0 // pred_check
    _
  $region15: #{dqn_forward.7} parent=0 // pred_check_branch
    %16 = sbr.rel (0) target = $region17
  $region16: #{dqn_forward.7} parent=0 // pred_region
    _
  $region17: #{dqn_forward.7} parent=0 // pred_fallthru
    _
  %v17 = vld [vmem:[%s0] sm:$0xff]
  %v18 = vld [vmem:[%s0 + $0x8] sm:$0xff]
  %v19 = vld [vmem:[%s0 + $0x10] sm:$0xff]
  %v20 = vld [vmem:[%s0 + $0x18] sm:$0xff]
  %v21 = vld [vmem:[%s1] sm:$0xff]
  %v22 = vld [vmem:[%s1 + $0x8] sm:$0xff]
  %v23 = vld [vmem:[%s1 + $0x10] sm:$0xff]
  %v24 = vld [vmem:[%s1 + $0x18] sm:$0xff]
  %v25 = vld [vmem:[%s1 + $0x20] sm:$0xff]
  %v26 = vld [vmem:[%s1 + $0x28] sm:$0xff]
  %v27 = vld [vmem:[%s1 + $0x30] sm:$0xff]
  %v28 = vld [vmem:[%s1 + $0x38] sm:$0xff]
  %v29 = vld [vmem:[%s1 + $0x40] sm:$0xff]
  %v30 = vld [vmem:[%s1 + $0x48] sm:$0xff]
  %v31 = vld [vmem:[%s1 + $0x50] sm:$0xff]
  %v32 = vld [vmem:[%s1 + $0x58] sm:$0xff]
  %v33 = vld [vmem:[%s1 + $0x60] sm:$0xff]
  %v34 = vld [vmem:[%s1 + $0x68] sm:$0xff]
  %v35 = vld [vmem:[%s1 + $0x70] sm:$0xff]
  %v36 = vld [vmem:[%s1 + $0x78] sm:$0xff]
  %v37 = vld [vmem:[%s1 + $0x80] sm:$0xff]
  %v38 = vld [vmem:[%s1 + $0x88] sm:$0xff]
  %v39 = vld [vmem:[%s1 + $0x90] sm:$0xff]
  %v40 = vld [vmem:[%s1 + $0x98] sm:$0xff]
  %v41 = vld [vmem:[%s1 + $0xa0] sm:$0xff]
  %v42 = vld [vmem:[%s1 + $0xa8] sm:$0xff]
  %v43 = vld [vmem:[%s1 + $0xb0] sm:$0xff]
  %v44 = vld [vmem:[%s1 + $0xb8] sm:$0xff]
  %v45 = vld [vmem:[%s1 + $0xc0] sm:$0xff]
  %v46 = vld [vmem:[%s1 + $0xc8] sm:$0xff]
  %v47 = vld [vmem:[%s1 + $0xd0] sm:$0xff]
  %v48 = vld [vmem:[%s1 + $0xd8] sm:$0xff]
  %v49 = vld [vmem:[%s1 + $0xe0] sm:$0xff]
  %v50 = vld [vmem:[%s1 + $0xe8] sm:$0xff]
  %v51 = vld [vmem:[%s1 + $0xf0] sm:$0xff]
  %v52 = vld [vmem:[%s1 + $0xf8] sm:$0xff]
  %v53 = vld [vmem:[%s1 + $0x100] sm:$0xff]
  %v54 = vld [vmem:[%s1 + $0x108] sm:$0xff]
  %v55 = vld [vmem:[%s1 + $0x110] sm:$0xff]
  %v56 = vld [vmem:[%s1 + $0x118] sm:$0xff]
  %v57 = vld [vmem:[%s1 + $0x120] sm:$0xff]
  %v58 = vld [vmem:[%s1 + $0x128] sm:$0xff]
  %v59 = vld [vmem:[%s1 + $0x130] sm:$0xff]
  %v60 = vld [vmem:[%s1 + $0x138] sm:$0xff]
  %v61 = vld [vmem:[%s1 + $0x140] sm:$0xff]
  %v62 = vld [vmem:[%s1 + $0x148] sm:$0xff]
  %v63 = vld [vmem:[%s1 + $0x150] sm:$0xff]
  %v64 = vld [vmem:[%s1 + $0x158] sm:$0xff]
  %v65 = vld [vmem:[%s1 + $0x160] sm:$0xff]
  %v66 = vld [vmem:[%s1 + $0x168] sm:$0xff]
  %v67 = vld [vmem:[%s1 + $0x170] sm:$0xff]
  %v68 = vld [vmem:[%s1 + $0x178] sm:$0xff]
  %v69 = vld [vmem:[%s1 + $0x180] sm:$0xff]
  %v70 = vld [vmem:[%s1 + $0x188] sm:$0xff]
  %v71 = vld [vmem:[%s1 + $0x190] sm:$0xff]
  %v72 = vld [vmem:[%s1 + $0x198] sm:$0xff]
  %v73 = vld [vmem:[%s1 + $0x1a0] sm:$0xff]
  %v74 = vld [vmem:[%s1 + $0x1a8] sm:$0xff]
  %v75 = vld [vmem:[%s1 + $0x1b0] sm:$0xff]
  %v76 = vld [vmem:[%s1 + $0x1b8] sm:$0xff]
  %v77 = vld [vmem:[%s1 + $0x1c0] sm:$0xff]
  %v78 = vld [vmem:[%s1 + $0x1c8] sm:$0xff]
  %v79 = vld [vmem:[%s1 + $0x1d0] sm:$0xff]
  %v80 = vld [vmem:[%s1 + $0x1d8] sm:$0xff]
  %v81 = vld [vmem:[%s1 + $0x1e0] sm:$0xff]
  %v82 = vld [vmem:[%s1 + $0x1e8] sm:$0xff]
  %v83 = vld [vmem:[%s1 + $0x1f0] sm:$0xff]
  %v84 = vld [vmem:[%s1 + $0x1f8] sm:$0xff]
  %85 = vmatprep.subr.mxu0 0.0
  %86 = vmatpush1.msra.mxu0 %v21
  %87 = vmatprep.subr.mxu0 0.0
  %88 = vmatpush1.msra.mxu0 %v22
  %89 = vmatprep.subr.mxu0 0.0
  %90 = vmatpush1.msra.mxu0 %v23
  %91 = vmatprep.subr.mxu0 0.0
  %92 = vmatpush1.msra.mxu0 %v24
  %93 = vmatprep.subr.mxu0 0.0
  %94 = vmatpush1.msra.mxu0 %v25
  %95 = vmatprep.subr.mxu0 0.0
  %96 = vmatpush1.msra.mxu0 %v26
  %97 = vmatprep.subr.mxu0 0.0
  %98 = vmatpush1.msra.mxu0 %v27
  %99 = vmatprep.subr.mxu0 0.0
  %100 = vmatpush1.msra.mxu0 %v28
  %101 = vmatprep.subr.mxu0 0.0
  %102 = vmatpush1.msra.mxu0 %v29
  %103 = vmatprep.subr.mxu0 0.0
  %104 = vmatpush1.msra.mxu0 %v30
  %105 = vmatprep.subr.mxu0 0.0
  %106 = vmatpush1.msra.mxu0 %v31
  %107 = vmatprep.subr.mxu0 0.0
  %108 = vmatpush1.msra.mxu0 %v32
  %109 = vmatprep.subr.mxu0 0.0
  %110 = vmatpush1.msra.mxu0 %v33
  %111 = vmatprep.subr.mxu0 0.0
  %112 = vmatpush1.msra.mxu0 %v34
  %113 = vmatprep.subr.mxu0 0.0
  %114 = vmatpush1.msra.mxu0 %v35
  %115 = vmatprep.subr.mxu0 0.0
  %116 = vmatpush1.msra.mxu0 %v36
  %117 = vmatprep.subr.mxu0 0.0
  %118 = vmatpush1.msra.mxu0 %v37
  %119 = vmatprep.subr.mxu0 0.0
  %120 = vmatpush1.msra.mxu0 %v38
  %121 = vmatprep.subr.mxu0 0.0
  %122 = vmatpush1.msra.mxu0 %v39
  %123 = vmatprep.subr.mxu0 0.0
  %124 = vmatpush1.msra.mxu0 %v40
  %125 = vmatprep.subr.mxu0 0.0
  %126 = vmatpush1.msra.mxu0 %v41
  %127 = vmatprep.subr.mxu0 0.0
  %128 = vmatpush1.msra.mxu0 %v42
  %129 = vmatprep.subr.mxu0 0.0
  %130 = vmatpush1.msra.mxu0 %v43
  %131 = vmatprep.subr.mxu0 0.0
  %132 = vmatpush1.msra.mxu0 %v44
  %133 = vmatprep.subr.mxu0 0.0
  %134 = vmatpush1.msra.mxu0 %v45
  %135 = vmatprep.subr.mxu0 0.0
  %136 = vmatpush1.msra.mxu0 %v46
  %137 = vmatprep.subr.mxu0 0.0
  %138 = vmatpush1.msra.mxu0 %v47
  %139 = vmatprep.subr.mxu0 0.0
  %140 = vmatpush1.msra.mxu0 %v48
  %141 = vmatprep.subr.mxu0 0.0
  %142 = vmatpush1.msra.mxu0 %v49
  %143 = vmatprep.subr.mxu0 0.0
  %144 = vmatpush1.msra.mxu0 %v50
  %145 = vmatprep.subr.mxu0 0.0
  %146 = vmatpush1.msra.mxu0 %v51
  %147 = vmatprep.subr.mxu0 0.0
  %148 = vmatpush1.msra.mxu0 %v52
  %149 = vmatprep.mubr.f32.mxu0 %v18
  %150 = vmatmul.mubr.f32.gmra.mrb[0].mxu0 %v17
  %v151 = vpop.f32.mrb[0].mxu0
  %v152 = vadd.f32 0.0, %v151
  %v153 = vpop.f32.mrb[0].mxu0
  %154 = vdwg.mxu0
  %155 = vmatprep.subr.mxu0 0.0
  %156 = vmatpush1.msra.mxu0 %v53
  %157 = vmatprep.subr.mxu0 0.0
  %158 = vmatpush1.msra.mxu0 %v54
  %159 = vmatprep.subr.mxu0 0.0
  %160 = vmatpush1.msra.mxu0 %v55
  %161 = vmatprep.subr.mxu0 0.0
  %162 = vmatpush1.msra.mxu0 %v56
  %163 = vmatprep.subr.mxu0 0.0
  %164 = vmatpush1.msra.mxu0 %v57
  %165 = vmatprep.subr.mxu0 0.0
  %166 = vmatpush1.msra.mxu0 %v58
  %167 = vmatprep.subr.mxu0 0.0
  %168 = vmatpush1.msra.mxu0 %v59
  %169 = vmatprep.subr.mxu0 0.0
  %170 = vmatpush1.msra.mxu0 %v60
  %171 = vmatprep.subr.mxu0 0.0
  %172 = vmatpush1.msra.mxu0 %v61
  %173 = vmatprep.subr.mxu0 0.0
  %174 = vmatpush1.msra.mxu0 %v62
  %175 = vmatprep.subr.mxu0 0.0
  %176 = vmatpush1.msra.mxu0 %v63
  %177 = vmatprep.subr.mxu0 0.0
  %178 = vmatpush1.msra.mxu0 %v64
  %179 = vmatprep.subr.mxu0 0.0
  %180 = vmatpush1.msra.mxu0 %v65
  %181 = vmatprep.subr.mxu0 0.0
  %182 = vmatpush1.msra.mxu0 %v66
  %183 = vmatprep.subr.mxu0 0.0
  %184 = vmatpush1.msra.mxu0 %v67
  %185 = vmatprep.subr.mxu0 0.0
  %186 = vmatpush1.msra.mxu0 %v68
  %187 = vmatprep.subr.mxu0 0.0
  %188 = vmatpush1.msra.mxu0 %v69
  %189 = vmatprep.subr.mxu0 0.0
  %190 = vmatpush1.msra.mxu0 %v70
  %191 = vmatprep.subr.mxu0 0.0
  %192 = vmatpush1.msra.mxu0 %v71
  %193 = vmatprep.subr.mxu0 0.0
  %194 = vmatpush1.msra.mxu0 %v72
  %195 = vmatprep.subr.mxu0 0.0
  %196 = vmatpush1.msra.mxu0 %v73
  %197 = vmatprep.subr.mxu0 0.0
  %198 = vmatpush1.msra.mxu0 %v74
  %199 = vmatprep.subr.mxu0 0.0
  %200 = vmatpush1.msra.mxu0 %v75
  %201 = vmatprep.subr.mxu0 0.0
  %202 = vmatpush1.msra.mxu0 %v76
  %203 = vmatprep.subr.mxu0 0.0
  %204 = vmatpush1.msra.mxu0 %v77
  %205 = vmatprep.subr.mxu0 0.0
  %206 = vmatpush1.msra.mxu0 %v78
  %207 = vmatprep.subr.mxu0 0.0
  %208 = vmatpush1.msra.mxu0 %v79
  %209 = vmatprep.subr.mxu0 0.0
  %210 = vmatpush1.msra.mxu0 %v80
  %211 = vmatprep.subr.mxu0 0.0
  %212 = vmatpush1.msra.mxu0 %v81
  %213 = vmatprep.subr.mxu0 0.0
  %214 = vmatpush1.msra.mxu0 %v82
  %215 = vmatprep.subr.mxu0 0.0
  %216 = vmatpush1.msra.mxu0 %v83
  %217 = vmatprep.subr.mxu0 0.0
  %218 = vmatpush1.msra.mxu0 %v84
  %219 = vmatprep.mubr.f32.mxu0 %v20
  %220 = vmatmul.mubr.f32.gmra.mrb[0].mxu0 %v19
  %v221 = vpop.f32.mrb[0].mxu0
  %v222 = vadd.f32 %v152, %v221
  %v223 = vpop.f32.mrb[0].mxu0
  %224 = vdwg.mxu0
  %v225 = vld [vmem:[%s2] sm:$0x1]
  %v227 = vlaneseq
  %v228 = vshrl.u32 %v227, 7
  %v229 = vsub.s32 0, %v228
  %v230 = vrot.slane %v225, %v229
  %v232 = vmul.f32 %v222, %v230
  %v233 = vld [vmem:[%s3] sm:$0x1]
  %v235 = vlaneseq
  %v236 = vshrl.u32 %v235, 7
  %v237 = vsub.s32 0, %v236
  %v238 = vrot.slane %v233, %v237
  %v240 = vadd.f32 %v232, %v238
  %vm241 = vcmask 15360
  %242 = vst.msk [vmem:[%s4] sm:$0xff] %vm241, %v240
  // Predicated region
  $region18: #{dqn_forward.7} parent=0 // pred_check
    _
  $region19: #{dqn_forward.7} parent=0 // pred_check_branch
    %244 = sbr.rel (0) target = $region21
  $region20: #{dqn_forward.7} parent=0 // pred_region
    _
  $region21: #{dqn_forward.7} parent=0 // pred_fallthru
    _
  // Predicated region
  $region22: #{dqn_forward.7} parent=0 // pred_check
    _
  $region23: #{dqn_forward.7} parent=0 // pred_check_branch
    %246 = sbr.rel (0) target = $region25
  $region24: #{dqn_forward.7} parent=0 // pred_region
    _
  $region25: #{dqn_forward.7} parent=0 // pred_fallthru
    _

</llo_original>
